<compile_context>
chip_gen: v7x
topology: tpu7x:2x2x1
jax: 0.10.0
libtpu: 0.0.40
codegen_flags: <defaults>
</compile_context>

<pallas_src>
import jax
import jax.numpy as jnp
from jax.experimental import pallas as pl
from jax.experimental.pallas import tpu as pltpu


def _round_up(v, m):
    return ((v + m - 1) // m) * m


# --------------------------------------------------------------------------- #
# Fused (matmul + folded-BN affine + ReLU) kernel.
# --------------------------------------------------------------------------- #
def _fused_matmul_bn_relu_kernel(x_ref, w_ref, scale_ref, shift_ref, o_ref, acc_ref):
    # x_ref: (tk, Ts)   w_ref: (Co, tk)   scale/shift: (Co, 1)   o_ref/acc: (Co, Ts)
    k = pl.program_id(2)

    @pl.when(k == 0)
    def _init():
        acc_ref[...] = jnp.zeros_like(acc_ref)

    acc_ref[...] += jnp.dot(w_ref[...], x_ref[...],
                            preferred_element_type=jnp.float32)

    @pl.when(k == pl.num_programs(2) - 1)
    def _finalize():
        y = acc_ref[...] * scale_ref[...] + shift_ref[...]   # f32 epilogue
        o_ref[...] = jnp.maximum(y, 0.0).astype(o_ref.dtype)


def fused_matmul_bn_relu(x_col, w, scale, shift, *, ts=2048,
                         compute_dtype=jnp.float32):
    """out[n, co, s] = relu(scale[co] * sum_k w[co, k] * x_col[n, k, s] + shift[co])."""
    N, K, S = x_col.shape
    Co = w.shape[0]

    # Tile sizing (sweepable). Stays well under a 32 MiB scoped-VMEM budget with
    # double buffering, so it is safe on v5e (16->32 MiB), v6e and v7x (64 MiB phys).
    Ts = min(ts, _round_up(S, 128))            # lane (spatial) tile, multiple of 128
    S_pad = _round_up(S, Ts)
    if K <= 1024:
        tk = _round_up(K, 16)                  # single K step (block == full dim)
    else:
        tk = 512                               # K-reduction grid axis, MXU-friendly
    K_pad = _round_up(K, tk)
    Co_pad = _round_up(Co, 16)

    x_p = jnp.pad(x_col, ((0, 0), (0, K_pad - K), (0, S_pad - S))).astype(compute_dtype)
    w_p = jnp.pad(w, ((0, Co_pad - Co), (0, K_pad - K))).astype(compute_dtype)
    scale_p = jnp.pad(scale, (0, Co_pad - Co)).reshape(Co_pad, 1).astype(jnp.float32)
    shift_p = jnp.pad(shift, (0, Co_pad - Co)).reshape(Co_pad, 1).astype(jnp.float32)

    ns, nk = S_pad // Ts, K_pad // tk
    itemsize = jnp.dtype(compute_dtype).itemsize
    cost = pl.CostEstimate(
        flops=2 * N * K_pad * S_pad * Co_pad,
        transcendentals=0,
        bytes_accessed=(N * K_pad * S_pad + Co_pad * K_pad) * itemsize
        + N * Co_pad * S_pad * 4,
    )

    out = pl.pallas_call(
        _fused_matmul_bn_relu_kernel,
        out_shape=jax.ShapeDtypeStruct((N, Co_pad, S_pad), jnp.float32),
        grid_spec=pltpu.PrefetchScalarGridSpec(
            num_scalar_prefetch=0,
            grid=(N, ns, nk),
            in_specs=[
                pl.BlockSpec((None, tk, Ts), lambda n, s, k: (n, k, s)),   # activations
                pl.BlockSpec((Co_pad, tk), lambda n, s, k: (0, k)),        # weights
                pl.BlockSpec((Co_pad, 1), lambda n, s, k: (0, 0)),         # BN scale
                pl.BlockSpec((Co_pad, 1), lambda n, s, k: (0, 0)),         # BN shift
            ],
            out_specs=pl.BlockSpec((None, Co_pad, Ts), lambda n, s, k: (n, 0, s)),
            scratch_shapes=[pltpu.VMEM((Co_pad, Ts), jnp.float32)],
        ),
        compiler_params=pltpu.CompilerParams(
            dimension_semantics=("parallel", "parallel", "arbitrary"),
            vmem_limit_bytes=32 * 1024 * 1024,
        ),
        cost_estimate=cost,
    )(x_p, w_p, scale_p, shift_p)

    return out[:, :Co, :S]


# --------------------------------------------------------------------------- #
# Wrapper glue (XLA): im2col, weight reshapes, BN folding, depth-to-space.
# --------------------------------------------------------------------------- #
def _im2col_3x3(x):
    """(N, C, H, W) -> (N, 9*C, H*W);  K index = (dy*3 + dx) * C + ci."""
    N, C, H, W = x.shape
    xp = jnp.pad(x, ((0, 0), (0, 0), (1, 1), (1, 1)))
    taps = [xp[:, :, dy:dy + H, dx:dx + W] for dy in range(3) for dx in range(3)]
    return jnp.concatenate(taps, axis=1).reshape(N, 9 * C, H * W)


def _bn_fold(conv_bias, gamma, beta, mean, var, eps=1e-5):
    scale = gamma / jnp.sqrt(var + eps)
    shift = (conv_bias - mean) * scale + beta
    return scale, shift


def unet_decoder_forward(x, params, *, ts=2048, compute_dtype=jnp.float32):
    N, Cin, H, W = x.shape
    w1, w2, wt = params["w1"], params["w2"], params["wt"]
    F = w1.shape[0]
    Cout = wt.shape[1]

    # Stage 1: Conv3x3 + BN + ReLU
    s1, sh1 = _bn_fold(params["b1"], params["g1"], params["be1"], params["m1"], params["v1"])
    wcol1 = jnp.transpose(w1, (0, 2, 3, 1)).reshape(F, 9 * Cin)
    y1 = fused_matmul_bn_relu(_im2col_3x3(x), wcol1, s1, sh1,
                              ts=ts, compute_dtype=compute_dtype)          # (N, F, H*W)

    # Stage 2: Conv3x3 + BN + ReLU
    s2, sh2 = _bn_fold(params["b2"], params["g2"], params["be2"], params["m2"], params["v2"])
    wcol2 = jnp.transpose(w2, (0, 2, 3, 1)).reshape(F, 9 * F)
    y2 = fused_matmul_bn_relu(_im2col_3x3(y1.reshape(N, F, H, W)), wcol2, s2, sh2,
                              ts=ts, compute_dtype=compute_dtype)          # (N, F, H*W)

    # Stage 3: ConvTranspose2d(k=2, s=2) + BN + ReLU.
    # stride == kernel -> each output pixel gets exactly one tap:
    #   out[n, co, 2h+dy, 2w+dx] = sum_ci x[n, ci, h, w] * Wt[ci, co, dy, dx] + b[co]
    s3, sh3 = _bn_fold(params["b3"], params["g3"], params["be3"], params["m3"], params["v3"])
    w_stk = jnp.transpose(wt, (2, 3, 1, 0)).reshape(4 * Cout, F)   # rows = (dy, dx, co)
    y3 = fused_matmul_bn_relu(y2, w_stk, jnp.tile(s3, 4), jnp.tile(sh3, 4),
                              ts=ts, compute_dtype=compute_dtype)          # (N, 4*Cout, H*W)

    # depth-to-space (XLA glue): (dy, dx, co, h, w) -> (co, 2h+dy, 2w+dx)
    y3 = y3.reshape(N, 2, 2, Cout, H, W)
    y3 = jnp.transpose(y3, (0, 3, 4, 1, 5, 2)).reshape(N, Cout, 2 * H, 2 * W)
    return y3


# --------------------------------------------------------------------------- #
# Plain-JAX reference (high precision) of the module's forward semantics.
# --------------------------------------------------------------------------- #
def unet_decoder_reference(x, params, eps=1e-5):
    hp = jax.lax.Precision.HIGHEST

    def bn_relu(z, g, be, m, v):
        z = (z - m[None, :, None, None]) / jnp.sqrt(v + eps)[None, :, None, None]
        z = z * g[None, :, None, None] + be[None, :, None, None]
        return jnp.maximum(z, 0.0)

    y = jax.lax.conv_general_dilated(
        x, params["w1"], (1, 1), ((1, 1), (1, 1)),
        dimension_numbers=("NCHW", "OIHW", "NCHW"), precision=hp)
    y = bn_relu(y + params["b1"][None, :, None, None],
                params["g1"], params["be1"], params["m1"], params["v1"])

    y = jax.lax.conv_general_dilated(
        y, params["w2"], (1, 1), ((1, 1), (1, 1)),
        dimension_numbers=("NCHW", "OIHW", "NCHW"), precision=hp)
    y = bn_relu(y + params["b2"][None, :, None, None],
                params["g2"], params["be2"], params["m2"], params["v2"])

    N, F, H, W = y.shape
    Cout = params["wt"].shape[1]
    z = jnp.einsum("nchw,coij->nohiwj", y, params["wt"], precision=hp)
    z = z.reshape(N, Cout, 2 * H, 2 * W) + params["b3"][None, :, None, None]
    return bn_relu(z, params["g3"], params["be3"], params["m3"], params["v3"])


# --------------------------------------------------------------------------- #
if __name__ == "__main__":
    key = jax.random.PRNGKey(0)
    ks = jax.random.split(key, 20)
    N, Cin, F, Cout, H, W = 2, 4, 32, 16, 16, 16

    x = jax.random.normal(ks[0], (N, Cin, H, W), jnp.float32)

    def nrm(k, shape, s):
        return jax.random.normal(k, shape, jnp.float32) * s

    params = {
        # Conv2d(Cin, F, 3, padding=1) + BatchNorm2d(F)
        "w1": nrm(ks[1], (F, Cin, 3, 3), 0.2), "b1": nrm(ks[2], (F,), 0.1),
        "g1": 1.0 + nrm(ks[3], (F,), 0.1), "be1": nrm(ks[4], (F,), 0.1),
        "m1": nrm(ks[5], (F,), 0.1),
        "v1": jax.random.uniform(ks[6], (F,), jnp.float32, 0.5, 1.5),
        # Conv2d(F, F, 3, padding=1) + BatchNorm2d(F)
        "w2": nrm(ks[7], (F, F, 3, 3), 0.1), "b2": nrm(ks[8], (F,), 0.1),
        "g2": 1.0 + nrm(ks[9], (F,), 0.1), "be2": nrm(ks[10], (F,), 0.1),
        "m2": nrm(ks[11], (F,), 0.1),
        "v2": jax.random.uniform(ks[12], (F,), jnp.float32, 0.5, 1.5),
        # ConvTranspose2d(F, Cout, 2, stride=2) + BatchNorm2d(Cout)
        "wt": nrm(ks[13], (F, Cout, 2, 2), 0.15), "b3": nrm(ks[14], (Cout,), 0.1),
        "g3": 1.0 + nrm(ks[15], (Cout,), 0.1), "be3": nrm(ks[16], (Cout,), 0.1),
        "m3": nrm(ks[17], (Cout,), 0.1),
        "v3": jax.random.uniform(ks[18], (Cout,), jnp.float32, 0.5, 1.5),
    }

    fwd = jax.jit(unet_decoder_forward, static_argnames=("ts", "compute_dtype"))

    out = jax.block_until_ready(fwd(x, params))
    ref = jax.block_until_ready(unet_decoder_reference(x, params))
    assert out.shape == (N, Cout, 2 * H, 2 * W), out.shape
    # Tolerances are loose because TPU matmuls may use bf16 passes internally for f32.
    err = float(jnp.max(jnp.abs(out - ref)))
    assert err < 0.25, f"f32-path max abs err {err}"

    # bf16 activations/weights inside the kernels, f32 accumulation + epilogue.
    out_bf16 = jax.block_until_ready(fwd(x, params, compute_dtype=jnp.bfloat16))
    err_bf16 = float(jnp.max(jnp.abs(out_bf16 - ref)))
    assert err_bf16 < 0.4, f"bf16-path max abs err {err_bf16}"

    print("KERNEL_OK")
</pallas_src>

<mosaic_0001>
module attributes {stable_mosaic.version = 11 : i64} {
  func.func @_fused_matmul_bn_relu_kernel(%arg0: i32, %arg1: i32, %arg2: i32, %arg3: memref<1x48x256xf32, #tpu.memory_space<vmem>>, %arg4: memref<32x48xf32, #tpu.memory_space<vmem>>, %arg5: memref<32x1xf32, #tpu.memory_space<vmem>>, %arg6: memref<32x1xf32, #tpu.memory_space<vmem>>, %arg7: memref<1x32x256xf32, #tpu.memory_space<vmem>>, %arg8: memref<32x256xf32, #tpu.memory_space<vmem>>) attributes {dimension_semantics = [#tpu.dimension_semantics<parallel>, #tpu.dimension_semantics<parallel>, #tpu.dimension_semantics<arbitrary>], iteration_bounds = array<i64: 2, 1, 1>, scalar_prefetch = 0 : i64, scratch_operands = 1 : i64, tpu.core_type = #tpu.core_type<tc>, window_params = [{transform_indices = @transform_0, window_bounds = array<i64: 1, 48, 256>}, {transform_indices = @transform_1, window_bounds = array<i64: 32, 48>}, {pipeline_mode = #tpu.pipeline_mode<synchronous>, transform_indices = @transform_2, window_bounds = array<i64: 32, 1>}, {pipeline_mode = #tpu.pipeline_mode<synchronous>, transform_indices = @transform_3, window_bounds = array<i64: 32, 1>}, {transform_indices = @transform_4, window_bounds = array<i64: 1, 32, 256>}]} {
    %c0_i32 = arith.constant 0 : i32
    %0 = arith.cmpi eq, %arg2, %c0_i32 : i32
    %1 = arith.extui %0 : i1 to i32
    %c0_i32_0 = arith.constant 0 : i32
    %2 = arith.cmpi ne, %1, %c0_i32_0 : i32
    scf.if %2 {
      %cst_11 = arith.constant 0.000000e+00 : f32
      %13 = vector.broadcast %cst_11 : f32 to vector<32x256xf32>
      %c0_12 = arith.constant 0 : index
      %c0_13 = arith.constant 0 : index
      %14 = vector.load %arg8[%c0_12, %c0_13] : memref<32x256xf32, #tpu.memory_space<vmem>>, vector<32x256xf32>
      tpu.vector_store %arg8[%c0_12, %c0_13], %13 {strides = array<i32>} : memref<32x256xf32, #tpu.memory_space<vmem>>, vector<32x256xf32>,
    } else {
    }
    %c0 = arith.constant 0 : index
    %c0_1 = arith.constant 0 : index
    %3 = vector.load %arg8[%c0, %c0_1] : memref<32x256xf32, #tpu.memory_space<vmem>>, vector<32x256xf32>
    %c0_2 = arith.constant 0 : index
    %c0_3 = arith.constant 0 : index
    %4 = vector.load %arg4[%c0_2, %c0_3] : memref<32x48xf32, #tpu.memory_space<vmem>>, vector<32x48xf32>
    %c0_4 = arith.constant 0 : index
    %c0_5 = arith.constant 0 : index
    %c0_6 = arith.constant 0 : index
    %5 = vector.load %arg3[%c0_4, %c0_5, %c0_6] : memref<1x48x256xf32, #tpu.memory_space<vmem>>, vector<1x48x256xf32>
    %6 = vector.shape_cast %5 : vector<1x48x256xf32> to vector<48x256xf32>
    %cst = arith.constant dense<0.000000e+00> : vector<32x256xf32>
    %7 = tpu.matmul %4, %6, %cst {dimension_numbers = #tpu.dot_dimension_numbers<[1], [0], [0], [1], [0, 0, 1, 1], [], []>} : vector<32x48xf32>, vector<48x256xf32>, vector<32x256xf32> -> vector<32x256xf32>
    %8 = arith.addf %3, %7 : vector<32x256xf32>
    %c0_7 = arith.constant 0 : index
    %c0_8 = arith.constant 0 : index
    %9 = vector.load %arg8[%c0_7, %c0_8] : memref<32x256xf32, #tpu.memory_space<vmem>>, vector<32x256xf32>
    tpu.vector_store %arg8[%c0_7, %c0_8], %8 {strides = array<i32>} : memref<32x256xf32, #tpu.memory_space<vmem>>, vector<32x256xf32>,
    %c0_i32_9 = arith.constant 0 : i32
    %10 = arith.cmpi eq, %arg2, %c0_i32_9 : i32
    %11 = arith.extui %10 : i1 to i32
    %c0_i32_10 = arith.constant 0 : i32
    %12 = arith.cmpi ne, %11, %c0_i32_10 : i32
    scf.if %12 {
      %c0_11 = arith.constant 0 : index
      %c0_12 = arith.constant 0 : index
      %13 = vector.load %arg8[%c0_11, %c0_12] : memref<32x256xf32, #tpu.memory_space<vmem>>, vector<32x256xf32>
      %c0_13 = arith.constant 0 : index
      %c0_14 = arith.constant 0 : index
      %14 = vector.load %arg5[%c0_13, %c0_14] : memref<32x1xf32, #tpu.memory_space<vmem>>, vector<32x1xf32>
      %15 = vector.broadcast %14 : vector<32x1xf32> to vector<32x256xf32>
      %16 = arith.mulf %13, %15 : vector<32x256xf32>
      %c0_15 = arith.constant 0 : index
      %c0_16 = arith.constant 0 : index
      %17 = vector.load %arg6[%c0_15, %c0_16] : memref<32x1xf32, #tpu.memory_space<vmem>>, vector<32x1xf32>
      %18 = vector.broadcast %17 : vector<32x1xf32> to vector<32x256xf32>
      %19 = arith.addf %16, %18 : vector<32x256xf32>
      %cst_17 = arith.constant 0.000000e+00 : f32
      %20 = vector.broadcast %cst_17 : f32 to vector<32x256xf32>
      %21 = arith.maximumf %19, %20 : vector<32x256xf32>
      %c0_18 = arith.constant 0 : index
      %c0_19 = arith.constant 0 : index
      %c0_20 = arith.constant 0 : index
      %22 = vector.load %arg7[%c0_18, %c0_19, %c0_20] : memref<1x32x256xf32, #tpu.memory_space<vmem>>, vector<1x32x256xf32>
      %23 = vector.shape_cast %22 : vector<1x32x256xf32> to vector<32x256xf32>
      %24 = vector.shape_cast %21 : vector<32x256xf32> to vector<1x32x256xf32>
      tpu.vector_store %arg7[%c0_18, %c0_19, %c0_20], %24 {strides = array<i32>} : memref<1x32x256xf32, #tpu.memory_space<vmem>>, vector<1x32x256xf32>,
    } else {
    }
    return
  }
  func.func @transform_0(%arg0: i32, %arg1: i32, %arg2: i32) -> (i32, i32, i32) {
    %c0_i32 = arith.constant 0 : i32
    return %arg0, %arg2, %arg1 : i32, i32, i32
  }
  func.func @transform_1(%arg0: i32, %arg1: i32, %arg2: i32) -> (i32, i32) {
    %c0_i32 = arith.constant 0 : i32
    %c0_i32_0 = arith.constant 0 : i32
    return %c0_i32, %arg2 : i32, i32
  }
  func.func @transform_2(%arg0: i32, %arg1: i32, %arg2: i32) -> (i32, i32) {
    %c0_i32 = arith.constant 0 : i32
    %c0_i32_0 = arith.constant 0 : i32
    %c0_i32_1 = arith.constant 0 : i32
    return %c0_i32, %c0_i32_0 : i32, i32
  }
  func.func @transform_3(%arg0: i32, %arg1: i32, %arg2: i32) -> (i32, i32) {
    %c0_i32 = arith.constant 0 : i32
    %c0_i32_0 = arith.constant 0 : i32
    %c0_i32_1 = arith.constant 0 : i32
    return %c0_i32, %c0_i32_0 : i32, i32
  }
  func.func @transform_4(%arg0: i32, %arg1: i32, %arg2: i32) -> (i32, i32, i32) {
    %c0_i32 = arith.constant 0 : i32
    %c0_i32_0 = arith.constant 0 : i32
    return %arg0, %c0_i32, %arg1 : i32, i32, i32
  }
}

module attributes {stable_mosaic.version = 11 : i64} {
  func.func @_fused_matmul_bn_relu_kernel(%arg0: i32, %arg1: i32, %arg2: i32, %arg3: memref<1x288x256xf32, #tpu.memory_space<vmem>>, %arg4: memref<32x288xf32, #tpu.memory_space<vmem>>, %arg5: memref<32x1xf32, #tpu.memory_space<vmem>>, %arg6: memref<32x1xf32, #tpu.memory_space<vmem>>, %arg7: memref<1x32x256xf32, #tpu.memory_space<vmem>>, %arg8: memref<32x256xf32, #tpu.memory_space<vmem>>) attributes {dimension_semantics = [#tpu.dimension_semantics<parallel>, #tpu.dimension_semantics<parallel>, #tpu.dimension_semantics<arbitrary>], iteration_bounds = array<i64: 2, 1, 1>, scalar_prefetch = 0 : i64, scratch_operands = 1 : i64, tpu.core_type = #tpu.core_type<tc>, window_params = [{transform_indices = @transform_0, window_bounds = array<i64: 1, 288, 256>}, {transform_indices = @transform_1, window_bounds = array<i64: 32, 288>}, {pipeline_mode = #tpu.pipeline_mode<synchronous>, transform_indices = @transform_2, window_bounds = array<i64: 32, 1>}, {pipeline_mode = #tpu.pipeline_mode<synchronous>, transform_indices = @transform_3, window_bounds = array<i64: 32, 1>}, {transform_indices = @transform_4, window_bounds = array<i64: 1, 32, 256>}]} {
    %c0_i32 = arith.constant 0 : i32
    %0 = arith.cmpi eq, %arg2, %c0_i32 : i32
    %1 = arith.extui %0 : i1 to i32
    %c0_i32_0 = arith.constant 0 : i32
    %2 = arith.cmpi ne, %1, %c0_i32_0 : i32
    scf.if %2 {
      %cst_11 = arith.constant 0.000000e+00 : f32
      %13 = vector.broadcast %cst_11 : f32 to vector<32x256xf32>
      %c0_12 = arith.constant 0 : index
      %c0_13 = arith.constant 0 : index
      %14 = vector.load %arg8[%c0_12, %c0_13] : memref<32x256xf32, #tpu.memory_space<vmem>>, vector<32x256xf32>
      tpu.vector_store %arg8[%c0_12, %c0_13], %13 {strides = array<i32>} : memref<32x256xf32, #tpu.memory_space<vmem>>, vector<32x256xf32>,
    } else {
    }
    %c0 = arith.constant 0 : index
    %c0_1 = arith.constant 0 : index
    %3 = vector.load %arg8[%c0, %c0_1] : memref<32x256xf32, #tpu.memory_space<vmem>>, vector<32x256xf32>
    %c0_2 = arith.constant 0 : index
    %c0_3 = arith.constant 0 : index
    %4 = vector.load %arg4[%c0_2, %c0_3] : memref<32x288xf32, #tpu.memory_space<vmem>>, vector<32x288xf32>
    %c0_4 = arith.constant 0 : index
    %c0_5 = arith.constant 0 : index
    %c0_6 = arith.constant 0 : index
    %5 = vector.load %arg3[%c0_4, %c0_5, %c0_6] : memref<1x288x256xf32, #tpu.memory_space<vmem>>, vector<1x288x256xf32>
    %6 = vector.shape_cast %5 : vector<1x288x256xf32> to vector<288x256xf32>
    %cst = arith.constant dense<0.000000e+00> : vector<32x256xf32>
    %7 = tpu.matmul %4, %6, %cst {dimension_numbers = #tpu.dot_dimension_numbers<[1], [0], [0], [1], [0, 0, 1, 1], [], []>} : vector<32x288xf32>, vector<288x256xf32>, vector<32x256xf32> -> vector<32x256xf32>
    %8 = arith.addf %3, %7 : vector<32x256xf32>
    %c0_7 = arith.constant 0 : index
    %c0_8 = arith.constant 0 : index
    %9 = vector.load %arg8[%c0_7, %c0_8] : memref<32x256xf32, #tpu.memory_space<vmem>>, vector<32x256xf32>
    tpu.vector_store %arg8[%c0_7, %c0_8], %8 {strides = array<i32>} : memref<32x256xf32, #tpu.memory_space<vmem>>, vector<32x256xf32>,
    %c0_i32_9 = arith.constant 0 : i32
    %10 = arith.cmpi eq, %arg2, %c0_i32_9 : i32
    %11 = arith.extui %10 : i1 to i32
    %c0_i32_10 = arith.constant 0 : i32
    %12 = arith.cmpi ne, %11, %c0_i32_10 : i32
    scf.if %12 {
      %c0_11 = arith.constant 0 : index
      %c0_12 = arith.constant 0 : index
      %13 = vector.load %arg8[%c0_11, %c0_12] : memref<32x256xf32, #tpu.memory_space<vmem>>, vector<32x256xf32>
      %c0_13 = arith.constant 0 : index
      %c0_14 = arith.constant 0 : index
      %14 = vector.load %arg5[%c0_13, %c0_14] : memref<32x1xf32, #tpu.memory_space<vmem>>, vector<32x1xf32>
      %15 = vector.broadcast %14 : vector<32x1xf32> to vector<32x256xf32>
      %16 = arith.mulf %13, %15 : vector<32x256xf32>
      %c0_15 = arith.constant 0 : index
      %c0_16 = arith.constant 0 : index
      %17 = vector.load %arg6[%c0_15, %c0_16] : memref<32x1xf32, #tpu.memory_space<vmem>>, vector<32x1xf32>
      %18 = vector.broadcast %17 : vector<32x1xf32> to vector<32x256xf32>
      %19 = arith.addf %16, %18 : vector<32x256xf32>
      %cst_17 = arith.constant 0.000000e+00 : f32
      %20 = vector.broadcast %cst_17 : f32 to vector<32x256xf32>
      %21 = arith.maximumf %19, %20 : vector<32x256xf32>
      %c0_18 = arith.constant 0 : index
      %c0_19 = arith.constant 0 : index
      %c0_20 = arith.constant 0 : index
      %22 = vector.load %arg7[%c0_18, %c0_19, %c0_20] : memref<1x32x256xf32, #tpu.memory_space<vmem>>, vector<1x32x256xf32>
      %23 = vector.shape_cast %22 : vector<1x32x256xf32> to vector<32x256xf32>
      %24 = vector.shape_cast %21 : vector<32x256xf32> to vector<1x32x256xf32>
      tpu.vector_store %arg7[%c0_18, %c0_19, %c0_20], %24 {strides = array<i32>} : memref<1x32x256xf32, #tpu.memory_space<vmem>>, vector<1x32x256xf32>,
    } else {
    }
    return
  }
  func.func @transform_0(%arg0: i32, %arg1: i32, %arg2: i32) -> (i32, i32, i32) {
    %c0_i32 = arith.constant 0 : i32
    return %arg0, %arg2, %arg1 : i32, i32, i32
  }
  func.func @transform_1(%arg0: i32, %arg1: i32, %arg2: i32) -> (i32, i32) {
    %c0_i32 = arith.constant 0 : i32
    %c0_i32_0 = arith.constant 0 : i32
    return %c0_i32, %arg2 : i32, i32
  }
  func.func @transform_2(%arg0: i32, %arg1: i32, %arg2: i32) -> (i32, i32) {
    %c0_i32 = arith.constant 0 : i32
    %c0_i32_0 = arith.constant 0 : i32
    %c0_i32_1 = arith.constant 0 : i32
    return %c0_i32, %c0_i32_0 : i32, i32
  }
  func.func @transform_3(%arg0: i32, %arg1: i32, %arg2: i32) -> (i32, i32) {
    %c0_i32 = arith.constant 0 : i32
    %c0_i32_0 = arith.constant 0 : i32
    %c0_i32_1 = arith.constant 0 : i32
    return %c0_i32, %c0_i32_0 : i32, i32
  }
  func.func @transform_4(%arg0: i32, %arg1: i32, %arg2: i32) -> (i32, i32, i32) {
    %c0_i32 = arith.constant 0 : i32
    %c0_i32_0 = arith.constant 0 : i32
    return %arg0, %c0_i32, %arg1 : i32, i32, i32
  }
}

module attributes {stable_mosaic.version = 11 : i64} {
  func.func @_fused_matmul_bn_relu_kernel(%arg0: i32, %arg1: i32, %arg2: i32, %arg3: memref<1x32x256xf32, #tpu.memory_space<vmem>>, %arg4: memref<64x32xf32, #tpu.memory_space<vmem>>, %arg5: memref<64x1xf32, #tpu.memory_space<vmem>>, %arg6: memref<64x1xf32, #tpu.memory_space<vmem>>, %arg7: memref<1x64x256xf32, #tpu.memory_space<vmem>>, %arg8: memref<64x256xf32, #tpu.memory_space<vmem>>) attributes {dimension_semantics = [#tpu.dimension_semantics<parallel>, #tpu.dimension_semantics<parallel>, #tpu.dimension_semantics<arbitrary>], iteration_bounds = array<i64: 2, 1, 1>, scalar_prefetch = 0 : i64, scratch_operands = 1 : i64, tpu.core_type = #tpu.core_type<tc>, window_params = [{transform_indices = @transform_0, window_bounds = array<i64: 1, 32, 256>}, {transform_indices = @transform_1, window_bounds = array<i64: 64, 32>}, {pipeline_mode = #tpu.pipeline_mode<synchronous>, transform_indices = @transform_2, window_bounds = array<i64: 64, 1>}, {pipeline_mode = #tpu.pipeline_mode<synchronous>, transform_indices = @transform_3, window_bounds = array<i64: 64, 1>}, {transform_indices = @transform_4, window_bounds = array<i64: 1, 64, 256>}]} {
    %c0_i32 = arith.constant 0 : i32
    %0 = arith.cmpi eq, %arg2, %c0_i32 : i32
    %1 = arith.extui %0 : i1 to i32
    %c0_i32_0 = arith.constant 0 : i32
    %2 = arith.cmpi ne, %1, %c0_i32_0 : i32
    scf.if %2 {
      %cst_11 = arith.constant 0.000000e+00 : f32
      %13 = vector.broadcast %cst_11 : f32 to vector<64x256xf32>
      %c0_12 = arith.constant 0 : index
      %c0_13 = arith.constant 0 : index
      %14 = vector.load %arg8[%c0_12, %c0_13] : memref<64x256xf32, #tpu.memory_space<vmem>>, vector<64x256xf32>
      tpu.vector_store %arg8[%c0_12, %c0_13], %13 {strides = array<i32>} : memref<64x256xf32, #tpu.memory_space<vmem>>, vector<64x256xf32>,
    } else {
    }
    %c0 = arith.constant 0 : index
    %c0_1 = arith.constant 0 : index
    %3 = vector.load %arg8[%c0, %c0_1] : memref<64x256xf32, #tpu.memory_space<vmem>>, vector<64x256xf32>
    %c0_2 = arith.constant 0 : index
    %c0_3 = arith.constant 0 : index
    %4 = vector.load %arg4[%c0_2, %c0_3] : memref<64x32xf32, #tpu.memory_space<vmem>>, vector<64x32xf32>
    %c0_4 = arith.constant 0 : index
    %c0_5 = arith.constant 0 : index
    %c0_6 = arith.constant 0 : index
    %5 = vector.load %arg3[%c0_4, %c0_5, %c0_6] : memref<1x32x256xf32, #tpu.memory_space<vmem>>, vector<1x32x256xf32>
    %6 = vector.shape_cast %5 : vector<1x32x256xf32> to vector<32x256xf32>
    %cst = arith.constant dense<0.000000e+00> : vector<64x256xf32>
    %7 = tpu.matmul %4, %6, %cst {dimension_numbers = #tpu.dot_dimension_numbers<[1], [0], [0], [1], [0, 0, 1, 1], [], []>} : vector<64x32xf32>, vector<32x256xf32>, vector<64x256xf32> -> vector<64x256xf32>
    %8 = arith.addf %3, %7 : vector<64x256xf32>
    %c0_7 = arith.constant 0 : index
    %c0_8 = arith.constant 0 : index
    %9 = vector.load %arg8[%c0_7, %c0_8] : memref<64x256xf32, #tpu.memory_space<vmem>>, vector<64x256xf32>
    tpu.vector_store %arg8[%c0_7, %c0_8], %8 {strides = array<i32>} : memref<64x256xf32, #tpu.memory_space<vmem>>, vector<64x256xf32>,
    %c0_i32_9 = arith.constant 0 : i32
    %10 = arith.cmpi eq, %arg2, %c0_i32_9 : i32
    %11 = arith.extui %10 : i1 to i32
    %c0_i32_10 = arith.constant 0 : i32
    %12 = arith.cmpi ne, %11, %c0_i32_10 : i32
    scf.if %12 {
      %c0_11 = arith.constant 0 : index
      %c0_12 = arith.constant 0 : index
      %13 = vector.load %arg8[%c0_11, %c0_12] : memref<64x256xf32, #tpu.memory_space<vmem>>, vector<64x256xf32>
      %c0_13 = arith.constant 0 : index
      %c0_14 = arith.constant 0 : index
      %14 = vector.load %arg5[%c0_13, %c0_14] : memref<64x1xf32, #tpu.memory_space<vmem>>, vector<64x1xf32>
      %15 = vector.broadcast %14 : vector<64x1xf32> to vector<64x256xf32>
      %16 = arith.mulf %13, %15 : vector<64x256xf32>
      %c0_15 = arith.constant 0 : index
      %c0_16 = arith.constant 0 : index
      %17 = vector.load %arg6[%c0_15, %c0_16] : memref<64x1xf32, #tpu.memory_space<vmem>>, vector<64x1xf32>
      %18 = vector.broadcast %17 : vector<64x1xf32> to vector<64x256xf32>
      %19 = arith.addf %16, %18 : vector<64x256xf32>
      %cst_17 = arith.constant 0.000000e+00 : f32
      %20 = vector.broadcast %cst_17 : f32 to vector<64x256xf32>
      %21 = arith.maximumf %19, %20 : vector<64x256xf32>
      %c0_18 = arith.constant 0 : index
      %c0_19 = arith.constant 0 : index
      %c0_20 = arith.constant 0 : index
      %22 = vector.load %arg7[%c0_18, %c0_19, %c0_20] : memref<1x64x256xf32, #tpu.memory_space<vmem>>, vector<1x64x256xf32>
      %23 = vector.shape_cast %22 : vector<1x64x256xf32> to vector<64x256xf32>
      %24 = vector.shape_cast %21 : vector<64x256xf32> to vector<1x64x256xf32>
      tpu.vector_store %arg7[%c0_18, %c0_19, %c0_20], %24 {strides = array<i32>} : memref<1x64x256xf32, #tpu.memory_space<vmem>>, vector<1x64x256xf32>,
    } else {
    }
    return
  }
  func.func @transform_0(%arg0: i32, %arg1: i32, %arg2: i32) -> (i32, i32, i32) {
    %c0_i32 = arith.constant 0 : i32
    return %arg0, %arg2, %arg1 : i32, i32, i32
  }
  func.func @transform_1(%arg0: i32, %arg1: i32, %arg2: i32) -> (i32, i32) {
    %c0_i32 = arith.constant 0 : i32
    %c0_i32_0 = arith.constant 0 : i32
    return %c0_i32, %arg2 : i32, i32
  }
  func.func @transform_2(%arg0: i32, %arg1: i32, %arg2: i32) -> (i32, i32) {
    %c0_i32 = arith.constant 0 : i32
    %c0_i32_0 = arith.constant 0 : i32
    %c0_i32_1 = arith.constant 0 : i32
    return %c0_i32, %c0_i32_0 : i32, i32
  }
  func.func @transform_3(%arg0: i32, %arg1: i32, %arg2: i32) -> (i32, i32) {
    %c0_i32 = arith.constant 0 : i32
    %c0_i32_0 = arith.constant 0 : i32
    %c0_i32_1 = arith.constant 0 : i32
    return %c0_i32, %c0_i32_0 : i32, i32
  }
  func.func @transform_4(%arg0: i32, %arg1: i32, %arg2: i32) -> (i32, i32, i32) {
    %c0_i32 = arith.constant 0 : i32
    %c0_i32_0 = arith.constant 0 : i32
    return %arg0, %c0_i32, %arg1 : i32, i32, i32
  }
}

</mosaic_0001>

<llo_original>
// kernel: tile.18
$region0: #{tile.18}
  #allocation0 [shape = 's32[1]{0}', space=sflag, size = 0x4, scoped, tag = 'scoped memory for tile.18']
  %s0 = inlined_call_operand.vmem [shape: f32[16], index: 0, kind: input, shape index: {}]
  %s1 = inlined_call_operand.vmem [shape: f32[4,16], index: 1, kind: output, shape index: {}]
  // Predicated region
  $region2: #{tile.18} parent=0 // pred_check
    _
  $region3: #{tile.18} parent=0 // pred_check_branch
    %3 = sbr.rel (0) target = $region5
  $region4: #{tile.18} parent=0 // pred_region
    _
  $region5: #{tile.18} parent=0 // pred_fallthru
    _
  %v4 = vld [vmem:[%s0] ss:$0 sm:$0xff]
  %5 = vst [vmem:[%s1] sm:$0xf] %v4

// kernel: unet_decoder_forward.3
$region0: #{unet_decoder_forward.3}
  #allocation0 [shape = 'u32[]', space=smem, size = 0x4, offset = 0x4, fixed_abs, tag = 'smem constant byte address 0x4 - core index']
  #allocation1 [shape = 'u32[144,128]{1,0:T(1,128)}', space=vmem, size = 0x12000, scoped, tag = 'internal scratch']
  #allocation2 [shape = 'f32[32,256]{1,0:T(8,128)}', space=vmem, size = 0x8000, scoped, tag = 'scratch operand']
  %s0 = inlined_call_operand.vmem [shape: f32[2,48,256], index: 0, kind: input, shape index: {}]
  %s1 = inlined_call_operand.vmem [shape: f32[32,48], index: 1, kind: input, shape index: {}]
  %s2 = inlined_call_operand.vmem [shape: f32[32,1], index: 2, kind: input, shape index: {}]
  %s3 = inlined_call_operand.vmem [shape: f32[32,1], index: 3, kind: input, shape index: {}]
  %s4 = inlined_call_operand.vmem [shape: f32[2,32,256], index: 4, kind: output, shape index: {}]
  %s5 = sld [smem:[#allocation0]]
  $region57: #{unet_decoder_forward.3} parent=0
    _
  %s7 = ssub.s32 1, %s5
  %s8 = scalar_select 0, %s7, %s5
  loop: start=0, step=1, limit=4
  $region2: #{unet_decoder_forward.3} parent=0 // loop_pre_header
    _
  $region3: #{unet_decoder_forward.3} parent=0 // loop_header
    %s10 = sphi 0, %s14
    %p11 = scmp.ge.s32.totalorder %s10, 4
    %s17 = sphi 0, %s36
    %s18 = sphi 0, %s32
    %s19 = sphi 0, %s28
    %s20 = sphi 0, %s17
    %s21 = sphi 0, %s18
    %s22 = sphi 0, %s19
    %s23 = sphi 0, %s20
    %s24 = sphi 0, %s21
    %s25 = sphi 0, %s22
    %s43 = sphi 0, %s45
    %s46 = sphi 0, %s43
    %s47 = sphi 0, %s46
    %s63 = sphi 0, %s47
    %s69 = sphi 0, %s71
    %s72 = sphi 0, %s69
    %s73 = sphi 0, %s72
    %s89 = sphi 0, %s73
    %s93 = sphi 0, %s93
    %s95 = sphi 0, %s93
    %s96 = sphi 0, %s95
    %s110 = sphi 0, %s96
    %s114 = sphi 0, %s114
    %s116 = sphi 0, %s114
    %s117 = sphi 0, %s116
    %s131 = sphi 0, %s117
    %s139 = sphi 0, %s141
    %s142 = sphi 0, %s139
    %s143 = sphi 0, %s142
    %s159 = sphi 0, %s143
  $region4: #{unet_decoder_forward.3} parent=0 // loop_header_branch
    %13 = sbr.rel (%p11) target = $region8
  $region5: #{unet_decoder_forward.3} parent=0 // loop_body
    %s15 = ssub.s32 %s10, 1
    %s16 = ssub.s32 %s10, 2
    %s26 = sadd.s32 1, %s19
    %p27 = scmp.ge.s32.totalorder %s26, 1
    %s28 = scalar_select %p27, 0, %s26
    %s29 = sadd.s32 1, %s18
    %s30 = scalar_select %p27, %s29, %s18
    %p31 = scmp.ge.s32.totalorder %s30, 1
    %s32 = scalar_select %p31, 0, %s30
    %s33 = sadd.s32 1, %s17
    %s34 = scalar_select %p31, %s33, %s17
    %p35 = scmp.ge.s32.totalorder %s34, 2
    %s36 = scalar_select %p35, 0, %s34
    %s37 = ssub.s32 %s17, %s36
    %s38 = ssub.s32 %s19, %s28
    %s39 = sor.u32 %s37, %s38
    %s40 = ssub.s32 %s18, %s32
    %s41 = sor.u32 %s39, %s40
    %p42 = scmp.eq.s32.totalorder %s41, 0
    %s44 = sadd.s32 %s43, 1
    %s45 = scalar_select %p42, %s43, %s44
    %p48 = pneg %p42
    %p49 = scmp.eq.s32.totalorder %s10, 1
    %p50 = por %p48, %p49
    %p51 = scmp.ne.s32.totalorder %s43, %s46
    %p52 = scmp.eq.s32.totalorder %s10, 0
    %p53 = por %p51, %p52
    %p54 = scmp.ne.s32.totalorder %s43, %s46
    %p55 = scmp.eq.s32.totalorder %s15, 1
    %p56 = por %p54, %p55
    %p57 = scmp.ne.s32.totalorder %s46, %s47
    %p58 = scmp.eq.s32.totalorder %s15, 0
    %p59 = por %p57, %p58
    %p60 = scmp.ne.s32.totalorder %s46, %s47
    %p61 = scmp.eq.s32.totalorder %s16, 1
    %p62 = por %p60, %p61
    %p64 = scmp.ne.s32.totalorder %s47, %s63
    %p65 = scmp.eq.s32.totalorder %s16, 0
    %p66 = por %p64, %p65
    %s67 = ssub.s32 %s19, %s28
    %p68 = scmp.eq.s32.totalorder %s67, 0
    %s70 = sadd.s32 %s69, 1
    %s71 = scalar_select %p68, %s69, %s70
    %p74 = pneg %p68
    %p75 = scmp.eq.s32.totalorder %s10, 1
    %p76 = por %p74, %p75
    %p77 = scmp.ne.s32.totalorder %s69, %s72
    %p78 = scmp.eq.s32.totalorder %s10, 0
    %p79 = por %p77, %p78
    %p80 = scmp.ne.s32.totalorder %s69, %s72
    %p81 = scmp.eq.s32.totalorder %s15, 1
    %p82 = por %p80, %p81
    %p83 = scmp.ne.s32.totalorder %s72, %s73
    %p84 = scmp.eq.s32.totalorder %s15, 0
    %p85 = por %p83, %p84
    %p86 = scmp.ne.s32.totalorder %s72, %s73
    %p87 = scmp.eq.s32.totalorder %s16, 1
    %p88 = por %p86, %p87
    %p90 = scmp.ne.s32.totalorder %s73, %s89
    %p91 = scmp.eq.s32.totalorder %s16, 0
    %p92 = por %p90, %p91
    %s94 = sadd.s32 %s93, 1
    %p97 = scmp.eq.s32.totalorder %s10, 1
    %p98 = scmp.ne.s32.totalorder %s93, %s95
    %p99 = scmp.eq.s32.totalorder %s10, 0
    %p100 = por %p98, %p99
    %p101 = scmp.ne.s32.totalorder %s93, %s95
    %p102 = scmp.eq.s32.totalorder %s15, 1
    %p103 = por %p101, %p102
    %p104 = scmp.ne.s32.totalorder %s95, %s96
    %p105 = scmp.eq.s32.totalorder %s15, 0
    %p106 = por %p104, %p105
    %p107 = scmp.ne.s32.totalorder %s95, %s96
    %p108 = scmp.eq.s32.totalorder %s16, 1
    %p109 = por %p107, %p108
    %p111 = scmp.ne.s32.totalorder %s96, %s110
    %p112 = scmp.eq.s32.totalorder %s16, 0
    %p113 = por %p111, %p112
    %s115 = sadd.s32 %s114, 1
    %p118 = scmp.eq.s32.totalorder %s10, 1
    %p119 = scmp.ne.s32.totalorder %s114, %s116
    %p120 = scmp.eq.s32.totalorder %s10, 0
    %p121 = por %p119, %p120
    %p122 = scmp.ne.s32.totalorder %s114, %s116
    %p123 = scmp.eq.s32.totalorder %s15, 1
    %p124 = por %p122, %p123
    %p125 = scmp.ne.s32.totalorder %s116, %s117
    %p126 = scmp.eq.s32.totalorder %s15, 0
    %p127 = por %p125, %p126
    %p128 = scmp.ne.s32.totalorder %s116, %s117
    %p129 = scmp.eq.s32.totalorder %s16, 1
    %p130 = por %p128, %p129
    %p132 = scmp.ne.s32.totalorder %s117, %s131
    %p133 = scmp.eq.s32.totalorder %s16, 0
    %p134 = por %p132, %p133
    %s135 = ssub.s32 %s17, %s36
    %s136 = ssub.s32 %s18, %s32
    %s137 = sor.u32 %s135, %s136
    %p138 = scmp.eq.s32.totalorder %s137, 0
    %s140 = sadd.s32 %s139, 1
    %s141 = scalar_select %p138, %s139, %s140
    %p144 = pneg %p138
    %p145 = scmp.eq.s32.totalorder %s10, 1
    %p146 = por %p144, %p145
    %p147 = scmp.ne.s32.totalorder %s139, %s142
    %p148 = scmp.eq.s32.totalorder %s10, 0
    %p149 = por %p147, %p148
    %p150 = scmp.ne.s32.totalorder %s139, %s142
    %p151 = scmp.eq.s32.totalorder %s15, 1
    %p152 = por %p150, %p151
    %p153 = scmp.ne.s32.totalorder %s142, %s143
    %p154 = scmp.eq.s32.totalorder %s15, 0
    %p155 = por %p153, %p154
    %p156 = scmp.ne.s32.totalorder %s142, %s143
    %p157 = scmp.eq.s32.totalorder %s16, 1
    %p158 = por %p156, %p157
    %p160 = scmp.ne.s32.totalorder %s143, %s159
    %p161 = scmp.eq.s32.totalorder %s16, 0
    %p162 = por %p160, %p161
    %p163 = scmp.le.s32.totalorder 1, %s10
    %p164 = scmp.lt.s32.totalorder %s10, 3
    %p165 = pnand %p163, %p164
    %p166 = pneg %p165
    // Predicated region
    $region9: #{unet_decoder_forward.3} parent=5 // pred_check
      _
    $region10: #{unet_decoder_forward.3} parent=5 // pred_check_branch
      %168 = sbr.rel (%p165) target = $region12
    $region11: #{unet_decoder_forward.3} parent=5 // pred_region
      %s169 = ssub.s32 %s10, 1
      // Predicated region
      $region13: #{unet_decoder_forward.3} parent=11 // pred_check
        %p170 = pneg %p85
      $region14: #{unet_decoder_forward.3} parent=11 // pred_check_branch
        %172 = sbr.rel (%p170) target = $region16
      $region15: #{unet_decoder_forward.3} parent=11 // pred_region
        %p173 = scmp.lt.s32.totalorder %s22, 0
        %s174 = scalar_select %p173, %s22, 0
        %s175 = smul.addr %s174, 8
        %s176 = scalar_lea.vmem %s1, %s175
      $region16: #{unet_decoder_forward.3} parent=11 // pred_fallthru
        _
      // Predicated region
      $region17: #{unet_decoder_forward.3} parent=11 // pred_check
        %p177 = pneg %p106
      $region18: #{unet_decoder_forward.3} parent=11 // pred_check_branch
        %179 = sbr.rel (%p177) target = $region20
      $region19: #{unet_decoder_forward.3} parent=11 // pred_region
        _
      $region20: #{unet_decoder_forward.3} parent=11 // pred_fallthru
        _
      // Predicated region
      $region21: #{unet_decoder_forward.3} parent=11 // pred_check
        %p180 = pneg %p127
      $region22: #{unet_decoder_forward.3} parent=11 // pred_check_branch
        %182 = sbr.rel (%p180) target = $region24
      $region23: #{unet_decoder_forward.3} parent=11 // pred_region
        _
      $region24: #{unet_decoder_forward.3} parent=11 // pred_fallthru
        _
    $region12: #{unet_decoder_forward.3} parent=5 // pred_fallthru
      _
    %p183 = scmp.lt.s32.totalorder %s10, 2
    // Predicated region
    $region25: #{unet_decoder_forward.3} parent=5 // pred_check
      %p184 = pneg %p183
    $region26: #{unet_decoder_forward.3} parent=5 // pred_check_branch
      %186 = sbr.rel (%p184) target = $region28
    $region27: #{unet_decoder_forward.3} parent=5 // pred_region
      // Predicated region
      $region29: #{unet_decoder_forward.3} parent=27 // pred_check
        %p187 = pneg %p53
      $region30: #{unet_decoder_forward.3} parent=27 // pred_check_branch
        %189 = sbr.rel (%p187) target = $region32
      $region31: #{unet_decoder_forward.3} parent=27 // pred_region
        %s190 = smul.u32 6, %s19
        %s191 = smul.u32 2, %s18
        %p192 = scmp.lt.s32.totalorder %s17, 1
        %s193 = scalar_select %p192, %s17, 1
        %p194 = scmp.lt.s32.totalorder %s190, 5
        %s195 = scalar_select %p194, %s190, 5
        %p196 = scmp.lt.s32.totalorder %s191, 1
        %s197 = scalar_select %p196, %s191, 1
        %s198 = smul.addr %s195, 2
        %s199 = sadd.s32 %s197, %s198
        %s200 = smul.addr %s193, 12
        %s201 = sadd.s32 %s199, %s200
        %s202 = smul.addr %s201, 8
        %s203 = scalar_lea.vmem %s0, %s202
        %s204 = smul.u32 6, %s19
        %s205 = smul.u32 2, %s18
      $region32: #{unet_decoder_forward.3} parent=27 // pred_fallthru
        _
    $region28: #{unet_decoder_forward.3} parent=5 // pred_fallthru
      _
    %p206 = scmp.le.s32.totalorder 1, %s10
    %p207 = scmp.lt.s32.totalorder %s10, 3
    %p208 = pnand %p206, %p207
    %p209 = pneg %p208
    // Predicated region
    $region33: #{unet_decoder_forward.3} parent=5 // pred_check
      _
    $region34: #{unet_decoder_forward.3} parent=5 // pred_check_branch
      %211 = sbr.rel (%p208) target = $region36
    $region35: #{unet_decoder_forward.3} parent=5 // pred_region
      %s212 = ssub.s32 %s10, 1
      %s213 = smul.u32 6, %s22
      %s214 = smul.u32 2, %s21
      %p215 = scmp.lt.s32.totalorder %s20, 1
      %s216 = scalar_select %p215, %s20, 1
      %p217 = scmp.lt.s32.totalorder %s213, 5
      %s218 = scalar_select %p217, %s213, 5
      %p219 = scmp.lt.s32.totalorder %s214, 1
      %s220 = scalar_select %p219, %s214, 1
      %s221 = smul.addr %s218, 2
      %s222 = sadd.s32 %s220, %s221
      %s223 = smul.addr %s216, 12
      %s224 = sadd.s32 %s222, %s223
      %s225 = smul.addr %s224, 8
      %s226 = scalar_lea.vmem %s0, %s225
      %p227 = pneg %p59
      %p228 = pneg %p56
      %p229 = scmp.lt.s32.totalorder %s22, 0
      %s230 = scalar_select %p229, %s22, 0
      %s231 = smul.addr %s230, 8
      %s232 = scalar_lea.vmem %s1, %s231
      %p233 = pneg %p85
      %p234 = pneg %p82
      %p235 = pneg %p106
      %p236 = pneg %p103
      %p237 = pneg %p127
      %p238 = pneg %p124
      %p239 = pneg %p155
      %p240 = pneg %p152
      %s241 = smul.u32 2, %s21
      %p242 = scmp.lt.s32.totalorder %s20, 1
      %s243 = scalar_select %p242, %s20, 1
      %p244 = scmp.lt.s32.totalorder %s241, 1
      %s245 = scalar_select %p244, %s241, 1
      %s246 = smul.addr %s243, 8
      %s247 = sadd.s32 %s245, %s246
      %s248 = smul.addr %s247, 8
      %s249 = scalar_lea.vmem %s4, %s248
      %s250 = smul.u32 6, %s22
      %s251 = smul.u32 2, %s21
      %p252 = scmp.lt.s32.totalorder %s20, 1
      %s253 = scalar_select %p252, %s20, 1
      %p254 = scmp.lt.s32.totalorder %s250, 5
      %s255 = scalar_select %p254, %s250, 5
      %p256 = scmp.lt.s32.totalorder %s251, 1
      %s257 = scalar_select %p256, %s251, 1
      %s258 = smul.addr %s255, 2
      %s259 = sadd.s32 %s257, %s258
      %s260 = smul.addr %s253, 12
      %s261 = sadd.s32 %s259, %s260
      %s262 = smul.addr %s261, 8
      %s263 = scalar_lea.vmem %s0, %s262
      %s264 = smul.u32 6, %s22
      %s265 = smul.u32 2, %s21
      %p266 = scmp.lt.s32.totalorder %s22, 0
      %s267 = scalar_select %p266, %s22, 0
      %s268 = smul.addr %s267, 8
      %s269 = scalar_lea.vmem %s1, %s268
      %s270 = smul.u32 2, %s21
      %p271 = scmp.lt.s32.totalorder %s20, 1
      %s272 = scalar_select %p271, %s20, 1
      %p273 = scmp.lt.s32.totalorder %s270, 1
      %s274 = scalar_select %p273, %s270, 1
      %s275 = smul.addr %s272, 8
      %s276 = sadd.s32 %s274, %s275
      %s277 = smul.addr %s276, 8
      %s278 = scalar_lea.vmem %s4, %s277
      %s279 = smul.u32 2, %s21
      %p280 = scmp.eq.s32.totalorder %s22, 0
      // Predicated region
      $region37: #{unet_decoder_forward.3} parent=35 // pred_check
        %p281 = pneg %p280
      $region38: #{unet_decoder_forward.3} parent=35 // pred_check_branch
        %283 = sbr.rel (%p281) target = $region40
      $region39: #{unet_decoder_forward.3} parent=35 // pred_region
        %284 = vst [vmem:[#allocation2] sm:$0xff] 0.0
        %285 = vst [vmem:[#allocation2 + $0x8] sm:$0xff] 0.0
        %286 = vst [vmem:[#allocation2 + $0x10] sm:$0xff] 0.0
        %287 = vst [vmem:[#allocation2 + $0x18] sm:$0xff] 0.0
        %288 = vst [vmem:[#allocation2 + $0x20] sm:$0xff] 0.0
        %289 = vst [vmem:[#allocation2 + $0x28] sm:$0xff] 0.0
        %290 = vst [vmem:[#allocation2 + $0x30] sm:$0xff] 0.0
        %291 = vst [vmem:[#allocation2 + $0x38] sm:$0xff] 0.0
      $region40: #{unet_decoder_forward.3} parent=35 // pred_fallthru
        _
      %v292 = vld [vmem:[#allocation2] sm:$0xff]
      %v293 = vld [vmem:[#allocation2 + $0x8] sm:$0xff]
      %v294 = vld [vmem:[#allocation2 + $0x10] sm:$0xff]
      %v295 = vld [vmem:[#allocation2 + $0x18] sm:$0xff]
      %v296 = vld [vmem:[#allocation2 + $0x20] sm:$0xff]
      %v297 = vld [vmem:[#allocation2 + $0x28] sm:$0xff]
      %v298 = vld [vmem:[#allocation2 + $0x30] sm:$0xff]
      %v299 = vld [vmem:[#allocation2 + $0x38] sm:$0xff]
      %v300 = vld [vmem:[%s269] sm:$0xff]
      %v301 = vld [vmem:[%s269 + $0x8] sm:$0xff]
      %v302 = vld [vmem:[%s269 + $0x10] sm:$0xff]
      %v303 = vld [vmem:[%s269 + $0x18] sm:$0xff]
      %v304 = vld [vmem:[%s263] sm:$0xff]
      %v305 = vld [vmem:[%s263 + $0x8] sm:$0xff]
      %v306 = vld [vmem:[%s263 + $0x10] sm:$0xff]
      %v307 = vld [vmem:[%s263 + $0x18] sm:$0xff]
      %v308 = vld [vmem:[%s263 + $0x20] sm:$0xff]
      %v309 = vld [vmem:[%s263 + $0x28] sm:$0xff]
      %v310 = vld [vmem:[%s263 + $0x30] sm:$0xff]
      %v311 = vld [vmem:[%s263 + $0x38] sm:$0xff]
      %v312 = vld [vmem:[%s263 + $0x40] sm:$0xff]
      %v313 = vld [vmem:[%s263 + $0x48] sm:$0xff]
      %v314 = vld [vmem:[%s263 + $0x50] sm:$0xff]
      %v315 = vld [vmem:[%s263 + $0x58] sm:$0xff]
      %vm316 = vcmask 392192
      %v318 = vsel %vm316, %v300, 0
      %v321 = vsel %vm316, %v301, 0
      %v324 = vsel %vm316, %v302, 0
      %v327 = vsel %vm316, %v303, 0
      %329 = vmatprep.subr.mxu0 %v305
      %330 = vmatpush1.msra.mxu0 %v304
      %331 = vmatprep.subr.mxu0 %v307
      %332 = vmatpush1.msra.mxu0 %v306
      %333 = vmatprep.subr.mxu0 %v309
      %334 = vmatpush1.msra.mxu0 %v308
      %335 = vmatprep.subr.mxu0 %v311
      %336 = vmatpush1.msra.mxu0 %v310
      %337 = vmatprep.subr.mxu0 %v313
      %338 = vmatpush1.msra.mxu0 %v312
      %339 = vmatprep.subr.mxu0 %v315
      %340 = vmatpush1.msra.mxu0 %v314
      %341 = vmatprep.subr.mxu0 0.0
      %342 = vmatpush1.msra.mxu0 0.0
      %343 = vmatprep.subr.mxu0 0.0
      %344 = vmatpush1.msra.mxu0 0.0
      %345 = vmatprep.subr.mxu0 0.0
      %346 = vmatpush1.msra.mxu0 0.0
      %347 = vmatprep.subr.mxu0 0.0
      %348 = vmatpush1.msra.mxu0 0.0
      %349 = vmatprep.subr.mxu0 0.0
      %350 = vmatpush1.msra.mxu0 0.0
      %351 = vmatprep.subr.mxu0 0.0
      %352 = vmatpush1.msra.mxu0 0.0
      %353 = vmatprep.subr.mxu0 0.0
      %354 = vmatpush1.msra.mxu0 0.0
      %355 = vmatprep.subr.mxu0 0.0
      %356 = vmatpush1.msra.mxu0 0.0
      %357 = vmatprep.subr.mxu0 0.0
      %358 = vmatpush1.msra.mxu0 0.0
      %359 = vmatprep.subr.mxu0 0.0
      %360 = vmatpush1.msra.mxu0 0.0
      %361 = vmatprep.subr.mxu0 0.0
      %362 = vmatpush1.msra.mxu0 0.0
      %363 = vmatprep.subr.mxu0 0.0
      %364 = vmatpush1.msra.mxu0 0.0
      %365 = vmatprep.subr.mxu0 0.0
      %366 = vmatpush1.msra.mxu0 0.0
      %367 = vmatprep.subr.mxu0 0.0
      %368 = vmatpush1.msra.mxu0 0.0
      %369 = vmatprep.subr.mxu0 0.0
      %370 = vmatpush1.msra.mxu0 0.0
      %371 = vmatprep.subr.mxu0 0.0
      %372 = vmatpush1.msra.mxu0 0.0
      %373 = vmatprep.subr.mxu0 0.0
      %374 = vmatpush1.msra.mxu0 0.0
      %375 = vmatprep.subr.mxu0 0.0
      %376 = vmatpush1.msra.mxu0 0.0
      %377 = vmatprep.subr.mxu0 0.0
      %378 = vmatpush1.msra.mxu0 0.0
      %379 = vmatprep.subr.mxu0 0.0
      %380 = vmatpush1.msra.mxu0 0.0
      %381 = vmatprep.subr.mxu0 0.0
      %382 = vmatpush1.msra.mxu0 0.0
      %383 = vmatprep.subr.mxu0 0.0
      %384 = vmatpush1.msra.mxu0 0.0
      %385 = vmatprep.subr.mxu0 0.0
      %386 = vmatpush1.msra.mxu0 0.0
      %387 = vmatprep.subr.mxu0 0.0
      %388 = vmatpush1.msra.mxu0 0.0
      %389 = vmatprep.subr.mxu0 0.0
      %390 = vmatpush1.msra.mxu0 0.0
      %391 = vmatprep.subr.mxu0 0.0
      %392 = vmatpush1.msra.mxu0 0.0
      %393 = vmatprep.mubr.f32.mxu0 0.0
      %394 = vmatmul.mubr.f32.gmra.mrb[0].mxu0 %v318
      %v395 = vpop.f32.mrb[0].mxu0
      %v396 = vadd.f32 0.0, %v395
      %v397 = vpop.f32.mrb[0].mxu0
      %v398 = vadd.f32 0.0, %v397
      %399 = vmatprep.mubr.f32.mxu0 0.0
      %400 = vmatmul.mubr.f32.gmra.mrb[0].mxu0 %v321
      %v401 = vpop.f32.mrb[0].mxu0
      %v402 = vadd.f32 0.0, %v401
      %v403 = vpop.f32.mrb[0].mxu0
      %v404 = vadd.f32 0.0, %v403
      %405 = vmatprep.mubr.f32.mxu0 0.0
      %406 = vmatmul.mubr.f32.gmra.mrb[0].mxu0 %v324
      %v407 = vpop.f32.mrb[0].mxu0
      %v408 = vadd.f32 0.0, %v407
      %v409 = vpop.f32.mrb[0].mxu0
      %v410 = vadd.f32 0.0, %v409
      %411 = vmatprep.mubr.f32.mxu0 0.0
      %412 = vmatmul.mubr.f32.gmra.mrb[0].mxu0 %v327
      %v413 = vpop.f32.mrb[0].mxu0
      %v414 = vadd.f32 0.0, %v413
      %v415 = vpop.f32.mrb[0].mxu0
      %v416 = vadd.f32 0.0, %v415
      %417 = vdwg.mxu0
      %v418 = vadd.f32 %v292, %v396
      %v419 = vadd.f32 %v293, %v398
      %v420 = vadd.f32 %v294, %v402
      %v421 = vadd.f32 %v295, %v404
      %v422 = vadd.f32 %v296, %v408
      %v423 = vadd.f32 %v297, %v410
      %v424 = vadd.f32 %v298, %v414
      %v425 = vadd.f32 %v299, %v416
      %426 = vst [vmem:[#allocation2] sm:$0xff] %v418
      %427 = vst [vmem:[#allocation2 + $0x8] sm:$0xff] %v419
      %428 = vst [vmem:[#allocation2 + $0x10] sm:$0xff] %v420
      %429 = vst [vmem:[#allocation2 + $0x18] sm:$0xff] %v421
      %430 = vst [vmem:[#allocation2 + $0x20] sm:$0xff] %v422
      %431 = vst [vmem:[#allocation2 + $0x28] sm:$0xff] %v423
      %432 = vst [vmem:[#allocation2 + $0x30] sm:$0xff] %v424
      %433 = vst [vmem:[#allocation2 + $0x38] sm:$0xff] %v425
      // Predicated region
      $region41: #{unet_decoder_forward.3} parent=35 // pred_check
        %p434 = pneg %p280
      $region42: #{unet_decoder_forward.3} parent=35 // pred_check_branch
        %436 = sbr.rel (%p434) target = $region44
      $region43: #{unet_decoder_forward.3} parent=35 // pred_region
        %v437 = vld [vmem:[#allocation2] sm:$0xff]
        %v438 = vld [vmem:[#allocation2 + $0x8] sm:$0xff]
        %v439 = vld [vmem:[#allocation2 + $0x10] sm:$0xff]
        %v440 = vld [vmem:[#allocation2 + $0x18] sm:$0xff]
        %v441 = vld [vmem:[#allocation2 + $0x20] sm:$0xff]
        %v442 = vld [vmem:[#allocation2 + $0x28] sm:$0xff]
        %v443 = vld [vmem:[#allocation2 + $0x30] sm:$0xff]
        %v444 = vld [vmem:[#allocation2 + $0x38] sm:$0xff]
        %v445 = vld [vmem:[%s2] sm:$0xff]
        %v446 = vld [vmem:[%s2 + $0x8] sm:$0xff]
        %v447 = vld [vmem:[%s2 + $0x10] sm:$0xff]
        %v448 = vld [vmem:[%s2 + $0x18] sm:$0xff]
        %450 = vset.pattern.permute.xlu0 0
        %451 = vperm.xlu0 %450, %v445
        %v452 = vpop.permute.xlu0 %451
        %455 = vset.pattern.permute.xlu0 0
        %456 = vperm.xlu0 %455, %v446
        %v457 = vpop.permute.xlu0 %456
        %460 = vset.pattern.permute.xlu0 0
        %461 = vperm.xlu0 %460, %v447
        %v462 = vpop.permute.xlu0 %461
        %465 = vset.pattern.permute.xlu0 0
        %466 = vperm.xlu0 %465, %v448
        %v467 = vpop.permute.xlu0 %466
        %v469 = vmul.f32 %v437, %v452
        %v470 = vmul.f32 %v438, %v452
        %v471 = vmul.f32 %v439, %v457
        %v472 = vmul.f32 %v440, %v457
        %v473 = vmul.f32 %v441, %v462
        %v474 = vmul.f32 %v442, %v462
        %v475 = vmul.f32 %v443, %v467
        %v476 = vmul.f32 %v444, %v467
        %v477 = vld [vmem:[%s3] sm:$0xff]
        %v478 = vld [vmem:[%s3 + $0x8] sm:$0xff]
        %v479 = vld [vmem:[%s3 + $0x10] sm:$0xff]
        %v480 = vld [vmem:[%s3 + $0x18] sm:$0xff]
        %482 = vset.pattern.permute.xlu0 0
        %483 = vperm.xlu0 %482, %v477
        %v484 = vpop.permute.xlu0 %483
        %487 = vset.pattern.permute.xlu0 0
        %488 = vperm.xlu0 %487, %v478
        %v489 = vpop.permute.xlu0 %488
        %492 = vset.pattern.permute.xlu0 0
        %493 = vperm.xlu0 %492, %v479
        %v494 = vpop.permute.xlu0 %493
        %497 = vset.pattern.permute.xlu0 0
        %498 = vperm.xlu0 %497, %v480
        %v499 = vpop.permute.xlu0 %498
        %v501 = vadd.f32 %v469, %v484
        %v502 = vadd.f32 %v470, %v484
        %v503 = vadd.f32 %v471, %v489
        %v504 = vadd.f32 %v472, %v489
        %v505 = vadd.f32 %v473, %v494
        %v506 = vadd.f32 %v474, %v494
        %v507 = vadd.f32 %v475, %v499
        %v508 = vadd.f32 %v476, %v499
        %v509 = vmax.f32 %v501, 0.0
        %v510 = vmax.f32 %v502, 0.0
        %v511 = vmax.f32 %v503, 0.0
        %v512 = vmax.f32 %v504, 0.0
        %v513 = vmax.f32 %v505, 0.0
        %v514 = vmax.f32 %v506, 0.0
        %v515 = vmax.f32 %v507, 0.0
        %v516 = vmax.f32 %v508, 0.0
        %517 = vst [vmem:[%s278] sm:$0xff] %v509
        %518 = vst [vmem:[%s278 + $0x8] sm:$0xff] %v510
        %519 = vst [vmem:[%s278 + $0x10] sm:$0xff] %v511
        %520 = vst [vmem:[%s278 + $0x18] sm:$0xff] %v512
        %521 = vst [vmem:[%s278 + $0x20] sm:$0xff] %v513
        %522 = vst [vmem:[%s278 + $0x28] sm:$0xff] %v514
        %523 = vst [vmem:[%s278 + $0x30] sm:$0xff] %v515
        %524 = vst [vmem:[%s278 + $0x38] sm:$0xff] %v516
      $region44: #{unet_decoder_forward.3} parent=35 // pred_fallthru
        _
      %s525 = smul.u32 2, %s21
      %p526 = scmp.lt.s32.totalorder %s20, 1
      %s527 = scalar_select %p526, %s20, 1
      %p528 = scmp.lt.s32.totalorder %s525, 1
      %s529 = scalar_select %p528, %s525, 1
      %s530 = smul.addr %s527, 8
      %s531 = sadd.s32 %s529, %s530
      %s532 = smul.addr %s531, 8
      %s533 = scalar_lea.vmem %s4, %s532
      // Predicated region
      $region45: #{unet_decoder_forward.3} parent=35 // pred_check
        %p534 = pneg %p152
      $region46: #{unet_decoder_forward.3} parent=35 // pred_check_branch
        %536 = sbr.rel (%p534) target = $region48
      $region47: #{unet_decoder_forward.3} parent=35 // pred_region
        %s537 = smul.u32 2, %s21
      $region48: #{unet_decoder_forward.3} parent=35 // pred_fallthru
        _
    $region36: #{unet_decoder_forward.3} parent=5 // pred_fallthru
      _
    %p538 = scmp.le.s32.totalorder 2, %s10
    // Predicated region
    $region49: #{unet_decoder_forward.3} parent=5 // pred_check
      %p539 = pneg %p538
    $region50: #{unet_decoder_forward.3} parent=5 // pred_check_branch
      %541 = sbr.rel (%p539) target = $region52
    $region51: #{unet_decoder_forward.3} parent=5 // pred_region
      %s542 = ssub.s32 %s10, 2
      // Predicated region
      $region53: #{unet_decoder_forward.3} parent=51 // pred_check
        %p543 = pneg %p158
      $region54: #{unet_decoder_forward.3} parent=51 // pred_check_branch
        %545 = sbr.rel (%p543) target = $region56
      $region55: #{unet_decoder_forward.3} parent=51 // pred_region
        %s546 = smul.u32 2, %s24
        %p547 = scmp.lt.s32.totalorder %s23, 1
        %s548 = scalar_select %p547, %s23, 1
        %p549 = scmp.lt.s32.totalorder %s546, 1
        %s550 = scalar_select %p549, %s546, 1
        %s551 = smul.addr %s548, 8
        %s552 = sadd.s32 %s550, %s551
        %s553 = smul.addr %s552, 8
        %s554 = scalar_lea.vmem %s4, %s553
      $region56: #{unet_decoder_forward.3} parent=51 // pred_fallthru
        _
    $region52: #{unet_decoder_forward.3} parent=5 // pred_fallthru
      _
  $region6: #{unet_decoder_forward.3} parent=0 // loop_footer
    %s14 = sadd.s32 1, %s10
  $region7: #{unet_decoder_forward.3} parent=0 // loop_footer_branch
    %9 = sbr.rel target = $region3
  $region8: #{unet_decoder_forward.3} parent=0 // loop_exit
    _

// kernel: unet_decoder_forward.4
$region0: #{unet_decoder_forward.4}
  #allocation0 [shape = 'u32[]', space=smem, size = 0x4, offset = 0x4, fixed_abs, tag = 'smem constant byte address 0x4 - core index']
  #allocation1 [shape = 'u32[144,128]{1,0:T(1,128)}', space=vmem, size = 0x12000, scoped, tag = 'internal scratch']
  #allocation2 [shape = 'f32[32,256]{1,0:T(8,128)}', space=vmem, size = 0x8000, scoped, tag = 'scratch operand']
  %s0 = inlined_call_operand.vmem [shape: f32[2,288,256], index: 0, kind: input, shape index: {}]
  %s1 = inlined_call_operand.vmem [shape: f32[32,288], index: 1, kind: input, shape index: {}]
  %s2 = inlined_call_operand.vmem [shape: f32[32,1], index: 2, kind: input, shape index: {}]
  %s3 = inlined_call_operand.vmem [shape: f32[32,1], index: 3, kind: input, shape index: {}]
  %s4 = inlined_call_operand.vmem [shape: f32[2,32,256], index: 4, kind: output, shape index: {}]
  %s5 = sld [smem:[#allocation0]]
  $region57: #{unet_decoder_forward.4} parent=0
    _
  %s7 = ssub.s32 1, %s5
  %s8 = scalar_select 0, %s7, %s5
  loop: start=0, step=1, limit=4
  $region2: #{unet_decoder_forward.4} parent=0 // loop_pre_header
    _
  $region3: #{unet_decoder_forward.4} parent=0 // loop_header
    %s10 = sphi 0, %s14
    %p11 = scmp.ge.s32.totalorder %s10, 4
    %s17 = sphi 0, %s36
    %s18 = sphi 0, %s32
    %s19 = sphi 0, %s28
    %s20 = sphi 0, %s17
    %s21 = sphi 0, %s18
    %s22 = sphi 0, %s19
    %s23 = sphi 0, %s20
    %s24 = sphi 0, %s21
    %s25 = sphi 0, %s22
    %s43 = sphi 0, %s45
    %s46 = sphi 0, %s43
    %s47 = sphi 0, %s46
    %s63 = sphi 0, %s47
    %s69 = sphi 0, %s71
    %s72 = sphi 0, %s69
    %s73 = sphi 0, %s72
    %s89 = sphi 0, %s73
    %s93 = sphi 0, %s93
    %s95 = sphi 0, %s93
    %s96 = sphi 0, %s95
    %s110 = sphi 0, %s96
    %s114 = sphi 0, %s114
    %s116 = sphi 0, %s114
    %s117 = sphi 0, %s116
    %s131 = sphi 0, %s117
    %s139 = sphi 0, %s141
    %s142 = sphi 0, %s139
    %s143 = sphi 0, %s142
    %s159 = sphi 0, %s143
  $region4: #{unet_decoder_forward.4} parent=0 // loop_header_branch
    %13 = sbr.rel (%p11) target = $region8
  $region5: #{unet_decoder_forward.4} parent=0 // loop_body
    %s15 = ssub.s32 %s10, 1
    %s16 = ssub.s32 %s10, 2
    %s26 = sadd.s32 1, %s19
    %p27 = scmp.ge.s32.totalorder %s26, 1
    %s28 = scalar_select %p27, 0, %s26
    %s29 = sadd.s32 1, %s18
    %s30 = scalar_select %p27, %s29, %s18
    %p31 = scmp.ge.s32.totalorder %s30, 1
    %s32 = scalar_select %p31, 0, %s30
    %s33 = sadd.s32 1, %s17
    %s34 = scalar_select %p31, %s33, %s17
    %p35 = scmp.ge.s32.totalorder %s34, 2
    %s36 = scalar_select %p35, 0, %s34
    %s37 = ssub.s32 %s17, %s36
    %s38 = ssub.s32 %s19, %s28
    %s39 = sor.u32 %s37, %s38
    %s40 = ssub.s32 %s18, %s32
    %s41 = sor.u32 %s39, %s40
    %p42 = scmp.eq.s32.totalorder %s41, 0
    %s44 = sadd.s32 %s43, 1
    %s45 = scalar_select %p42, %s43, %s44
    %p48 = pneg %p42
    %p49 = scmp.eq.s32.totalorder %s10, 1
    %p50 = por %p48, %p49
    %p51 = scmp.ne.s32.totalorder %s43, %s46
    %p52 = scmp.eq.s32.totalorder %s10, 0
    %p53 = por %p51, %p52
    %p54 = scmp.ne.s32.totalorder %s43, %s46
    %p55 = scmp.eq.s32.totalorder %s15, 1
    %p56 = por %p54, %p55
    %p57 = scmp.ne.s32.totalorder %s46, %s47
    %p58 = scmp.eq.s32.totalorder %s15, 0
    %p59 = por %p57, %p58
    %p60 = scmp.ne.s32.totalorder %s46, %s47
    %p61 = scmp.eq.s32.totalorder %s16, 1
    %p62 = por %p60, %p61
    %p64 = scmp.ne.s32.totalorder %s47, %s63
    %p65 = scmp.eq.s32.totalorder %s16, 0
    %p66 = por %p64, %p65
    %s67 = ssub.s32 %s19, %s28
    %p68 = scmp.eq.s32.totalorder %s67, 0
    %s70 = sadd.s32 %s69, 1
    %s71 = scalar_select %p68, %s69, %s70
    %p74 = pneg %p68
    %p75 = scmp.eq.s32.totalorder %s10, 1
    %p76 = por %p74, %p75
    %p77 = scmp.ne.s32.totalorder %s69, %s72
    %p78 = scmp.eq.s32.totalorder %s10, 0
    %p79 = por %p77, %p78
    %p80 = scmp.ne.s32.totalorder %s69, %s72
    %p81 = scmp.eq.s32.totalorder %s15, 1
    %p82 = por %p80, %p81
    %p83 = scmp.ne.s32.totalorder %s72, %s73
    %p84 = scmp.eq.s32.totalorder %s15, 0
    %p85 = por %p83, %p84
    %p86 = scmp.ne.s32.totalorder %s72, %s73
    %p87 = scmp.eq.s32.totalorder %s16, 1
    %p88 = por %p86, %p87
    %p90 = scmp.ne.s32.totalorder %s73, %s89
    %p91 = scmp.eq.s32.totalorder %s16, 0
    %p92 = por %p90, %p91
    %s94 = sadd.s32 %s93, 1
    %p97 = scmp.eq.s32.totalorder %s10, 1
    %p98 = scmp.ne.s32.totalorder %s93, %s95
    %p99 = scmp.eq.s32.totalorder %s10, 0
    %p100 = por %p98, %p99
    %p101 = scmp.ne.s32.totalorder %s93, %s95
    %p102 = scmp.eq.s32.totalorder %s15, 1
    %p103 = por %p101, %p102
    %p104 = scmp.ne.s32.totalorder %s95, %s96
    %p105 = scmp.eq.s32.totalorder %s15, 0
    %p106 = por %p104, %p105
    %p107 = scmp.ne.s32.totalorder %s95, %s96
    %p108 = scmp.eq.s32.totalorder %s16, 1
    %p109 = por %p107, %p108
    %p111 = scmp.ne.s32.totalorder %s96, %s110
    %p112 = scmp.eq.s32.totalorder %s16, 0
    %p113 = por %p111, %p112
    %s115 = sadd.s32 %s114, 1
    %p118 = scmp.eq.s32.totalorder %s10, 1
    %p119 = scmp.ne.s32.totalorder %s114, %s116
    %p120 = scmp.eq.s32.totalorder %s10, 0
    %p121 = por %p119, %p120
    %p122 = scmp.ne.s32.totalorder %s114, %s116
    %p123 = scmp.eq.s32.totalorder %s15, 1
    %p124 = por %p122, %p123
    %p125 = scmp.ne.s32.totalorder %s116, %s117
    %p126 = scmp.eq.s32.totalorder %s15, 0
    %p127 = por %p125, %p126
    %p128 = scmp.ne.s32.totalorder %s116, %s117
    %p129 = scmp.eq.s32.totalorder %s16, 1
    %p130 = por %p128, %p129
    %p132 = scmp.ne.s32.totalorder %s117, %s131
    %p133 = scmp.eq.s32.totalorder %s16, 0
    %p134 = por %p132, %p133
    %s135 = ssub.s32 %s17, %s36
    %s136 = ssub.s32 %s18, %s32
    %s137 = sor.u32 %s135, %s136
    %p138 = scmp.eq.s32.totalorder %s137, 0
    %s140 = sadd.s32 %s139, 1
    %s141 = scalar_select %p138, %s139, %s140
    %p144 = pneg %p138
    %p145 = scmp.eq.s32.totalorder %s10, 1
    %p146 = por %p144, %p145
    %p147 = scmp.ne.s32.totalorder %s139, %s142
    %p148 = scmp.eq.s32.totalorder %s10, 0
    %p149 = por %p147, %p148
    %p150 = scmp.ne.s32.totalorder %s139, %s142
    %p151 = scmp.eq.s32.totalorder %s15, 1
    %p152 = por %p150, %p151
    %p153 = scmp.ne.s32.totalorder %s142, %s143
    %p154 = scmp.eq.s32.totalorder %s15, 0
    %p155 = por %p153, %p154
    %p156 = scmp.ne.s32.totalorder %s142, %s143
    %p157 = scmp.eq.s32.totalorder %s16, 1
    %p158 = por %p156, %p157
    %p160 = scmp.ne.s32.totalorder %s143, %s159
    %p161 = scmp.eq.s32.totalorder %s16, 0
    %p162 = por %p160, %p161
    %p163 = scmp.le.s32.totalorder 1, %s10
    %p164 = scmp.lt.s32.totalorder %s10, 3
    %p165 = pnand %p163, %p164
    %p166 = pneg %p165
    // Predicated region
    $region9: #{unet_decoder_forward.4} parent=5 // pred_check
      _
    $region10: #{unet_decoder_forward.4} parent=5 // pred_check_branch
      %168 = sbr.rel (%p165) target = $region12
    $region11: #{unet_decoder_forward.4} parent=5 // pred_region
      %s169 = ssub.s32 %s10, 1
      // Predicated region
      $region13: #{unet_decoder_forward.4} parent=11 // pred_check
        %p170 = pneg %p85
      $region14: #{unet_decoder_forward.4} parent=11 // pred_check_branch
        %172 = sbr.rel (%p170) target = $region16
      $region15: #{unet_decoder_forward.4} parent=11 // pred_region
        %s173 = smul.u32 3, %s22
        %p174 = scmp.lt.s32.totalorder %s173, 2
        %s175 = scalar_select %p174, %s173, 2
        %s176 = smul.addr %s175, 8
        %s177 = scalar_lea.vmem %s1, %s176
        %s178 = smul.u32 3, %s22
      $region16: #{unet_decoder_forward.4} parent=11 // pred_fallthru
        _
      // Predicated region
      $region17: #{unet_decoder_forward.4} parent=11 // pred_check
        %p179 = pneg %p106
      $region18: #{unet_decoder_forward.4} parent=11 // pred_check_branch
        %181 = sbr.rel (%p179) target = $region20
      $region19: #{unet_decoder_forward.4} parent=11 // pred_region
        _
      $region20: #{unet_decoder_forward.4} parent=11 // pred_fallthru
        _
      // Predicated region
      $region21: #{unet_decoder_forward.4} parent=11 // pred_check
        %p182 = pneg %p127
      $region22: #{unet_decoder_forward.4} parent=11 // pred_check_branch
        %184 = sbr.rel (%p182) target = $region24
      $region23: #{unet_decoder_forward.4} parent=11 // pred_region
        _
      $region24: #{unet_decoder_forward.4} parent=11 // pred_fallthru
        _
    $region12: #{unet_decoder_forward.4} parent=5 // pred_fallthru
      _
    %p185 = scmp.lt.s32.totalorder %s10, 2
    // Predicated region
    $region25: #{unet_decoder_forward.4} parent=5 // pred_check
      %p186 = pneg %p185
    $region26: #{unet_decoder_forward.4} parent=5 // pred_check_branch
      %188 = sbr.rel (%p186) target = $region28
    $region27: #{unet_decoder_forward.4} parent=5 // pred_region
      // Predicated region
      $region29: #{unet_decoder_forward.4} parent=27 // pred_check
        %p189 = pneg %p53
      $region30: #{unet_decoder_forward.4} parent=27 // pred_check_branch
        %191 = sbr.rel (%p189) target = $region32
      $region31: #{unet_decoder_forward.4} parent=27 // pred_region
        %s192 = smul.u32 36, %s19
        %s193 = smul.u32 2, %s18
        %p194 = scmp.lt.s32.totalorder %s17, 1
        %s195 = scalar_select %p194, %s17, 1
        %p196 = scmp.lt.s32.totalorder %s192, 35
        %s197 = scalar_select %p196, %s192, 35
        %p198 = scmp.lt.s32.totalorder %s193, 1
        %s199 = scalar_select %p198, %s193, 1
        %s200 = smul.addr %s197, 2
        %s201 = sadd.s32 %s199, %s200
        %s202 = smul.addr %s195, 72
        %s203 = sadd.s32 %s201, %s202
        %s204 = smul.addr %s203, 8
        %s205 = scalar_lea.vmem %s0, %s204
        %s206 = smul.u32 36, %s19
        %s207 = smul.u32 2, %s18
      $region32: #{unet_decoder_forward.4} parent=27 // pred_fallthru
        _
    $region28: #{unet_decoder_forward.4} parent=5 // pred_fallthru
      _
    %p208 = scmp.le.s32.totalorder 1, %s10
    %p209 = scmp.lt.s32.totalorder %s10, 3
    %p210 = pnand %p208, %p209
    %p211 = pneg %p210
    // Predicated region
    $region33: #{unet_decoder_forward.4} parent=5 // pred_check
      _
    $region34: #{unet_decoder_forward.4} parent=5 // pred_check_branch
      %213 = sbr.rel (%p210) target = $region36
    $region35: #{unet_decoder_forward.4} parent=5 // pred_region
      %s214 = ssub.s32 %s10, 1
      %s215 = smul.u32 36, %s22
      %s216 = smul.u32 2, %s21
      %p217 = scmp.lt.s32.totalorder %s20, 1
      %s218 = scalar_select %p217, %s20, 1
      %p219 = scmp.lt.s32.totalorder %s215, 35
      %s220 = scalar_select %p219, %s215, 35
      %p221 = scmp.lt.s32.totalorder %s216, 1
      %s222 = scalar_select %p221, %s216, 1
      %s223 = smul.addr %s220, 2
      %s224 = sadd.s32 %s222, %s223
      %s225 = smul.addr %s218, 72
      %s226 = sadd.s32 %s224, %s225
      %s227 = smul.addr %s226, 8
      %s228 = scalar_lea.vmem %s0, %s227
      %p229 = pneg %p59
      %p230 = pneg %p56
      %s231 = smul.u32 3, %s22
      %p232 = scmp.lt.s32.totalorder %s231, 2
      %s233 = scalar_select %p232, %s231, 2
      %s234 = smul.addr %s233, 8
      %s235 = scalar_lea.vmem %s1, %s234
      %p236 = pneg %p85
      %p237 = pneg %p82
      %p238 = pneg %p106
      %p239 = pneg %p103
      %p240 = pneg %p127
      %p241 = pneg %p124
      %p242 = pneg %p155
      %p243 = pneg %p152
      %s244 = smul.u32 2, %s21
      %p245 = scmp.lt.s32.totalorder %s20, 1
      %s246 = scalar_select %p245, %s20, 1
      %p247 = scmp.lt.s32.totalorder %s244, 1
      %s248 = scalar_select %p247, %s244, 1
      %s249 = smul.addr %s246, 8
      %s250 = sadd.s32 %s248, %s249
      %s251 = smul.addr %s250, 8
      %s252 = scalar_lea.vmem %s4, %s251
      %s253 = smul.u32 36, %s22
      %s254 = smul.u32 2, %s21
      %p255 = scmp.lt.s32.totalorder %s20, 1
      %s256 = scalar_select %p255, %s20, 1
      %p257 = scmp.lt.s32.totalorder %s253, 35
      %s258 = scalar_select %p257, %s253, 35
      %p259 = scmp.lt.s32.totalorder %s254, 1
      %s260 = scalar_select %p259, %s254, 1
      %s261 = smul.addr %s258, 2
      %s262 = sadd.s32 %s260, %s261
      %s263 = smul.addr %s256, 72
      %s264 = sadd.s32 %s262, %s263
      %s265 = smul.addr %s264, 8
      %s266 = scalar_lea.vmem %s0, %s265
      %s267 = smul.u32 36, %s22
      %s268 = smul.u32 2, %s21
      %s269 = smul.u32 3, %s22
      %p270 = scmp.lt.s32.totalorder %s269, 2
      %s271 = scalar_select %p270, %s269, 2
      %s272 = smul.addr %s271, 8
      %s273 = scalar_lea.vmem %s1, %s272
      %s274 = smul.u32 3, %s22
      %s275 = smul.u32 2, %s21
      %p276 = scmp.lt.s32.totalorder %s20, 1
      %s277 = scalar_select %p276, %s20, 1
      %p278 = scmp.lt.s32.totalorder %s275, 1
      %s279 = scalar_select %p278, %s275, 1
      %s280 = smul.addr %s277, 8
      %s281 = sadd.s32 %s279, %s280
      %s282 = smul.addr %s281, 8
      %s283 = scalar_lea.vmem %s4, %s282
      %s284 = smul.u32 2, %s21
      %p285 = scmp.eq.s32.totalorder %s22, 0
      // Predicated region
      $region37: #{unet_decoder_forward.4} parent=35 // pred_check
        %p286 = pneg %p285
      $region38: #{unet_decoder_forward.4} parent=35 // pred_check_branch
        %288 = sbr.rel (%p286) target = $region40
      $region39: #{unet_decoder_forward.4} parent=35 // pred_region
        %289 = vst [vmem:[#allocation2] sm:$0xff] 0.0
        %290 = vst [vmem:[#allocation2 + $0x8] sm:$0xff] 0.0
        %291 = vst [vmem:[#allocation2 + $0x10] sm:$0xff] 0.0
        %292 = vst [vmem:[#allocation2 + $0x18] sm:$0xff] 0.0
        %293 = vst [vmem:[#allocation2 + $0x20] sm:$0xff] 0.0
        %294 = vst [vmem:[#allocation2 + $0x28] sm:$0xff] 0.0
        %295 = vst [vmem:[#allocation2 + $0x30] sm:$0xff] 0.0
        %296 = vst [vmem:[#allocation2 + $0x38] sm:$0xff] 0.0
      $region40: #{unet_decoder_forward.4} parent=35 // pred_fallthru
        _
      %v297 = vld [vmem:[#allocation2] sm:$0xff]
      %v298 = vld [vmem:[#allocation2 + $0x8] sm:$0xff]
      %v299 = vld [vmem:[#allocation2 + $0x10] sm:$0xff]
      %v300 = vld [vmem:[#allocation2 + $0x18] sm:$0xff]
      %v301 = vld [vmem:[#allocation2 + $0x20] sm:$0xff]
      %v302 = vld [vmem:[#allocation2 + $0x28] sm:$0xff]
      %v303 = vld [vmem:[#allocation2 + $0x30] sm:$0xff]
      %v304 = vld [vmem:[#allocation2 + $0x38] sm:$0xff]
      %v305 = vld [vmem:[%s273] sm:$0xff]
      %v306 = vld [vmem:[%s273 + $0x8] sm:$0xff]
      %v307 = vld [vmem:[%s273 + $0x10] sm:$0xff]
      %v308 = vld [vmem:[%s273 + $0x18] sm:$0xff]
      %v309 = vld [vmem:[%s273 + $0x20] sm:$0xff]
      %v310 = vld [vmem:[%s273 + $0x28] sm:$0xff]
      %v311 = vld [vmem:[%s273 + $0x30] sm:$0xff]
      %v312 = vld [vmem:[%s273 + $0x38] sm:$0xff]
      %v313 = vld [vmem:[%s273 + $0x40] sm:$0xff]
      %v314 = vld [vmem:[%s273 + $0x48] sm:$0xff]
      %v315 = vld [vmem:[%s273 + $0x50] sm:$0xff]
      %v316 = vld [vmem:[%s273 + $0x58] sm:$0xff]
      %v317 = vld [vmem:[%s266] sm:$0xff]
      %v318 = vld [vmem:[%s266 + $0x8] sm:$0xff]
      %v319 = vld [vmem:[%s266 + $0x10] sm:$0xff]
      %v320 = vld [vmem:[%s266 + $0x18] sm:$0xff]
      %v321 = vld [vmem:[%s266 + $0x20] sm:$0xff]
      %v322 = vld [vmem:[%s266 + $0x28] sm:$0xff]
      %v323 = vld [vmem:[%s266 + $0x30] sm:$0xff]
      %v324 = vld [vmem:[%s266 + $0x38] sm:$0xff]
      %v325 = vld [vmem:[%s266 + $0x40] sm:$0xff]
      %v326 = vld [vmem:[%s266 + $0x48] sm:$0xff]
      %v327 = vld [vmem:[%s266 + $0x50] sm:$0xff]
      %v328 = vld [vmem:[%s266 + $0x58] sm:$0xff]
      %v329 = vld [vmem:[%s266 + $0x60] sm:$0xff]
      %v330 = vld [vmem:[%s266 + $0x68] sm:$0xff]
      %v331 = vld [vmem:[%s266 + $0x70] sm:$0xff]
      %v332 = vld [vmem:[%s266 + $0x78] sm:$0xff]
      %v333 = vld [vmem:[%s266 + $0x80] sm:$0xff]
      %v334 = vld [vmem:[%s266 + $0x88] sm:$0xff]
      %v335 = vld [vmem:[%s266 + $0x90] sm:$0xff]
      %v336 = vld [vmem:[%s266 + $0x98] sm:$0xff]
      %v337 = vld [vmem:[%s266 + $0xa0] sm:$0xff]
      %v338 = vld [vmem:[%s266 + $0xa8] sm:$0xff]
      %v339 = vld [vmem:[%s266 + $0xb0] sm:$0xff]
      %v340 = vld [vmem:[%s266 + $0xb8] sm:$0xff]
      %v341 = vld [vmem:[%s266 + $0xc0] sm:$0xff]
      %v342 = vld [vmem:[%s266 + $0xc8] sm:$0xff]
      %v343 = vld [vmem:[%s266 + $0xd0] sm:$0xff]
      %v344 = vld [vmem:[%s266 + $0xd8] sm:$0xff]
      %v345 = vld [vmem:[%s266 + $0xe0] sm:$0xff]
      %v346 = vld [vmem:[%s266 + $0xe8] sm:$0xff]
      %v347 = vld [vmem:[%s266 + $0xf0] sm:$0xff]
      %v348 = vld [vmem:[%s266 + $0xf8] sm:$0xff]
      %v349 = vld [vmem:[%s266 + $0x100] sm:$0xff]
      %v350 = vld [vmem:[%s266 + $0x108] sm:$0xff]
      %v351 = vld [vmem:[%s266 + $0x110] sm:$0xff]
      %v352 = vld [vmem:[%s266 + $0x118] sm:$0xff]
      %v353 = vld [vmem:[%s266 + $0x120] sm:$0xff]
      %v354 = vld [vmem:[%s266 + $0x128] sm:$0xff]
      %v355 = vld [vmem:[%s266 + $0x130] sm:$0xff]
      %v356 = vld [vmem:[%s266 + $0x138] sm:$0xff]
      %v357 = vld [vmem:[%s266 + $0x140] sm:$0xff]
      %v358 = vld [vmem:[%s266 + $0x148] sm:$0xff]
      %v359 = vld [vmem:[%s266 + $0x150] sm:$0xff]
      %v360 = vld [vmem:[%s266 + $0x158] sm:$0xff]
      %v361 = vld [vmem:[%s266 + $0x160] sm:$0xff]
      %v362 = vld [vmem:[%s266 + $0x168] sm:$0xff]
      %v363 = vld [vmem:[%s266 + $0x170] sm:$0xff]
      %v364 = vld [vmem:[%s266 + $0x178] sm:$0xff]
      %v365 = vld [vmem:[%s266 + $0x180] sm:$0xff]
      %v366 = vld [vmem:[%s266 + $0x188] sm:$0xff]
      %v367 = vld [vmem:[%s266 + $0x190] sm:$0xff]
      %v368 = vld [vmem:[%s266 + $0x198] sm:$0xff]
      %v369 = vld [vmem:[%s266 + $0x1a0] sm:$0xff]
      %v370 = vld [vmem:[%s266 + $0x1a8] sm:$0xff]
      %v371 = vld [vmem:[%s266 + $0x1b0] sm:$0xff]
      %v372 = vld [vmem:[%s266 + $0x1b8] sm:$0xff]
      %v373 = vld [vmem:[%s266 + $0x1c0] sm:$0xff]
      %v374 = vld [vmem:[%s266 + $0x1c8] sm:$0xff]
      %v375 = vld [vmem:[%s266 + $0x1d0] sm:$0xff]
      %v376 = vld [vmem:[%s266 + $0x1d8] sm:$0xff]
      %v377 = vld [vmem:[%s266 + $0x1e0] sm:$0xff]
      %v378 = vld [vmem:[%s266 + $0x1e8] sm:$0xff]
      %v379 = vld [vmem:[%s266 + $0x1f0] sm:$0xff]
      %v380 = vld [vmem:[%s266 + $0x1f8] sm:$0xff]
      %v381 = vld [vmem:[%s266 + $0x200] sm:$0xff]
      %v382 = vld [vmem:[%s266 + $0x208] sm:$0xff]
      %v383 = vld [vmem:[%s266 + $0x210] sm:$0xff]
      %v384 = vld [vmem:[%s266 + $0x218] sm:$0xff]
      %v385 = vld [vmem:[%s266 + $0x220] sm:$0xff]
      %v386 = vld [vmem:[%s266 + $0x228] sm:$0xff]
      %v387 = vld [vmem:[%s266 + $0x230] sm:$0xff]
      %v388 = vld [vmem:[%s266 + $0x238] sm:$0xff]
      %vm389 = vcmask 261120
      %v391 = vsel %vm389, %v307, 0
      %v394 = vsel %vm389, %v310, 0
      %v397 = vsel %vm389, %v313, 0
      %v400 = vsel %vm389, %v316, 0
      %402 = vmatprep.subr.mxu0 %v318
      %403 = vmatpush1.msra.mxu0 %v317
      %404 = vmatprep.subr.mxu0 %v320
      %405 = vmatpush1.msra.mxu0 %v319
      %406 = vmatprep.subr.mxu0 %v322
      %407 = vmatpush1.msra.mxu0 %v321
      %408 = vmatprep.subr.mxu0 %v324
      %409 = vmatpush1.msra.mxu0 %v323
      %410 = vmatprep.subr.mxu0 %v326
      %411 = vmatpush1.msra.mxu0 %v325
      %412 = vmatprep.subr.mxu0 %v328
      %413 = vmatpush1.msra.mxu0 %v327
      %414 = vmatprep.subr.mxu0 %v330
      %415 = vmatpush1.msra.mxu0 %v329
      %416 = vmatprep.subr.mxu0 %v332
      %417 = vmatpush1.msra.mxu0 %v331
      %418 = vmatprep.subr.mxu0 %v334
      %419 = vmatpush1.msra.mxu0 %v333
      %420 = vmatprep.subr.mxu0 %v336
      %421 = vmatpush1.msra.mxu0 %v335
      %422 = vmatprep.subr.mxu0 %v338
      %423 = vmatpush1.msra.mxu0 %v337
      %424 = vmatprep.subr.mxu0 %v340
      %425 = vmatpush1.msra.mxu0 %v339
      %426 = vmatprep.subr.mxu0 %v342
      %427 = vmatpush1.msra.mxu0 %v341
      %428 = vmatprep.subr.mxu0 %v344
      %429 = vmatpush1.msra.mxu0 %v343
      %430 = vmatprep.subr.mxu0 %v346
      %431 = vmatpush1.msra.mxu0 %v345
      %432 = vmatprep.subr.mxu0 %v348
      %433 = vmatpush1.msra.mxu0 %v347
      %434 = vmatprep.subr.mxu0 %v350
      %435 = vmatpush1.msra.mxu0 %v349
      %436 = vmatprep.subr.mxu0 %v352
      %437 = vmatpush1.msra.mxu0 %v351
      %438 = vmatprep.subr.mxu0 %v354
      %439 = vmatpush1.msra.mxu0 %v353
      %440 = vmatprep.subr.mxu0 %v356
      %441 = vmatpush1.msra.mxu0 %v355
      %442 = vmatprep.subr.mxu0 %v358
      %443 = vmatpush1.msra.mxu0 %v357
      %444 = vmatprep.subr.mxu0 %v360
      %445 = vmatpush1.msra.mxu0 %v359
      %446 = vmatprep.subr.mxu0 %v362
      %447 = vmatpush1.msra.mxu0 %v361
      %448 = vmatprep.subr.mxu0 %v364
      %449 = vmatpush1.msra.mxu0 %v363
      %450 = vmatprep.subr.mxu0 %v366
      %451 = vmatpush1.msra.mxu0 %v365
      %452 = vmatprep.subr.mxu0 %v368
      %453 = vmatpush1.msra.mxu0 %v367
      %454 = vmatprep.subr.mxu0 %v370
      %455 = vmatpush1.msra.mxu0 %v369
      %456 = vmatprep.subr.mxu0 %v372
      %457 = vmatpush1.msra.mxu0 %v371
      %458 = vmatprep.subr.mxu0 %v374
      %459 = vmatpush1.msra.mxu0 %v373
      %460 = vmatprep.subr.mxu0 %v376
      %461 = vmatpush1.msra.mxu0 %v375
      %462 = vmatprep.subr.mxu0 %v378
      %463 = vmatpush1.msra.mxu0 %v377
      %464 = vmatprep.subr.mxu0 %v380
      %465 = vmatpush1.msra.mxu0 %v379
      %466 = vmatprep.mubr.f32.mxu0 %v306
      %467 = vmatmul.mubr.f32.gmra.mrb[0].mxu0 %v305
      %v468 = vpop.f32.mrb[0].mxu0
      %v469 = vadd.f32 0.0, %v468
      %v470 = vpop.f32.mrb[0].mxu0
      %v471 = vadd.f32 0.0, %v470
      %472 = vmatprep.mubr.f32.mxu0 %v309
      %473 = vmatmul.mubr.f32.gmra.mrb[0].mxu0 %v308
      %v474 = vpop.f32.mrb[0].mxu0
      %v475 = vadd.f32 0.0, %v474
      %v476 = vpop.f32.mrb[0].mxu0
      %v477 = vadd.f32 0.0, %v476
      %478 = vmatprep.mubr.f32.mxu0 %v312
      %479 = vmatmul.mubr.f32.gmra.mrb[0].mxu0 %v311
      %v480 = vpop.f32.mrb[0].mxu0
      %v481 = vadd.f32 0.0, %v480
      %v482 = vpop.f32.mrb[0].mxu0
      %v483 = vadd.f32 0.0, %v482
      %484 = vmatprep.mubr.f32.mxu0 %v315
      %485 = vmatmul.mubr.f32.gmra.mrb[0].mxu0 %v314
      %v486 = vpop.f32.mrb[0].mxu0
      %v487 = vadd.f32 0.0, %v486
      %v488 = vpop.f32.mrb[0].mxu0
      %v489 = vadd.f32 0.0, %v488
      %490 = vdwg.mxu0
      %491 = vmatprep.subr.mxu0 %v382
      %492 = vmatpush1.msra.mxu0 %v381
      %493 = vmatprep.subr.mxu0 %v384
      %494 = vmatpush1.msra.mxu0 %v383
      %495 = vmatprep.subr.mxu0 %v386
      %496 = vmatpush1.msra.mxu0 %v385
      %497 = vmatprep.subr.mxu0 %v388
      %498 = vmatpush1.msra.mxu0 %v387
      %499 = vmatprep.subr.mxu0 0.0
      %500 = vmatpush1.msra.mxu0 0.0
      %501 = vmatprep.subr.mxu0 0.0
      %502 = vmatpush1.msra.mxu0 0.0
      %503 = vmatprep.subr.mxu0 0.0
      %504 = vmatpush1.msra.mxu0 0.0
      %505 = vmatprep.subr.mxu0 0.0
      %506 = vmatpush1.msra.mxu0 0.0
      %507 = vmatprep.subr.mxu0 0.0
      %508 = vmatpush1.msra.mxu0 0.0
      %509 = vmatprep.subr.mxu0 0.0
      %510 = vmatpush1.msra.mxu0 0.0
      %511 = vmatprep.subr.mxu0 0.0
      %512 = vmatpush1.msra.mxu0 0.0
      %513 = vmatprep.subr.mxu0 0.0
      %514 = vmatpush1.msra.mxu0 0.0
      %515 = vmatprep.subr.mxu0 0.0
      %516 = vmatpush1.msra.mxu0 0.0
      %517 = vmatprep.subr.mxu0 0.0
      %518 = vmatpush1.msra.mxu0 0.0
      %519 = vmatprep.subr.mxu0 0.0
      %520 = vmatpush1.msra.mxu0 0.0
      %521 = vmatprep.subr.mxu0 0.0
      %522 = vmatpush1.msra.mxu0 0.0
      %523 = vmatprep.subr.mxu0 0.0
      %524 = vmatpush1.msra.mxu0 0.0
      %525 = vmatprep.subr.mxu0 0.0
      %526 = vmatpush1.msra.mxu0 0.0
      %527 = vmatprep.subr.mxu0 0.0
      %528 = vmatpush1.msra.mxu0 0.0
      %529 = vmatprep.subr.mxu0 0.0
      %530 = vmatpush1.msra.mxu0 0.0
      %531 = vmatprep.subr.mxu0 0.0
      %532 = vmatpush1.msra.mxu0 0.0
      %533 = vmatprep.subr.mxu0 0.0
      %534 = vmatpush1.msra.mxu0 0.0
      %535 = vmatprep.subr.mxu0 0.0
      %536 = vmatpush1.msra.mxu0 0.0
      %537 = vmatprep.subr.mxu0 0.0
      %538 = vmatpush1.msra.mxu0 0.0
      %539 = vmatprep.subr.mxu0 0.0
      %540 = vmatpush1.msra.mxu0 0.0
      %541 = vmatprep.subr.mxu0 0.0
      %542 = vmatpush1.msra.mxu0 0.0
      %543 = vmatprep.subr.mxu0 0.0
      %544 = vmatpush1.msra.mxu0 0.0
      %545 = vmatprep.subr.mxu0 0.0
      %546 = vmatpush1.msra.mxu0 0.0
      %547 = vmatprep.subr.mxu0 0.0
      %548 = vmatpush1.msra.mxu0 0.0
      %549 = vmatprep.subr.mxu0 0.0
      %550 = vmatpush1.msra.mxu0 0.0
      %551 = vmatprep.subr.mxu0 0.0
      %552 = vmatpush1.msra.mxu0 0.0
      %553 = vmatprep.subr.mxu0 0.0
      %554 = vmatpush1.msra.mxu0 0.0
      %555 = vmatprep.mubr.f32.mxu0 0.0
      %556 = vmatmul.mubr.f32.gmra.mrb[0].mxu0 %v391
      %v557 = vpop.f32.mrb[0].mxu0
      %v558 = vadd.f32 %v469, %v557
      %v559 = vpop.f32.mrb[0].mxu0
      %v560 = vadd.f32 %v471, %v559
      %561 = vmatprep.mubr.f32.mxu0 0.0
      %562 = vmatmul.mubr.f32.gmra.mrb[0].mxu0 %v394
      %v563 = vpop.f32.mrb[0].mxu0
      %v564 = vadd.f32 %v475, %v563
      %v565 = vpop.f32.mrb[0].mxu0
      %v566 = vadd.f32 %v477, %v565
      %567 = vmatprep.mubr.f32.mxu0 0.0
      %568 = vmatmul.mubr.f32.gmra.mrb[0].mxu0 %v397
      %v569 = vpop.f32.mrb[0].mxu0
      %v570 = vadd.f32 %v481, %v569
      %v571 = vpop.f32.mrb[0].mxu0
      %v572 = vadd.f32 %v483, %v571
      %573 = vmatprep.mubr.f32.mxu0 0.0
      %574 = vmatmul.mubr.f32.gmra.mrb[0].mxu0 %v400
      %v575 = vpop.f32.mrb[0].mxu0
      %v576 = vadd.f32 %v487, %v575
      %v577 = vpop.f32.mrb[0].mxu0
      %v578 = vadd.f32 %v489, %v577
      %579 = vdwg.mxu0
      %v580 = vadd.f32 %v297, %v558
      %v581 = vadd.f32 %v298, %v560
      %v582 = vadd.f32 %v299, %v564
      %v583 = vadd.f32 %v300, %v566
      %v584 = vadd.f32 %v301, %v570
      %v585 = vadd.f32 %v302, %v572
      %v586 = vadd.f32 %v303, %v576
      %v587 = vadd.f32 %v304, %v578
      %588 = vst [vmem:[#allocation2] sm:$0xff] %v580
      %589 = vst [vmem:[#allocation2 + $0x8] sm:$0xff] %v581
      %590 = vst [vmem:[#allocation2 + $0x10] sm:$0xff] %v582
      %591 = vst [vmem:[#allocation2 + $0x18] sm:$0xff] %v583
      %592 = vst [vmem:[#allocation2 + $0x20] sm:$0xff] %v584
      %593 = vst [vmem:[#allocation2 + $0x28] sm:$0xff] %v585
      %594 = vst [vmem:[#allocation2 + $0x30] sm:$0xff] %v586
      %595 = vst [vmem:[#allocation2 + $0x38] sm:$0xff] %v587
      // Predicated region
      $region41: #{unet_decoder_forward.4} parent=35 // pred_check
        %p596 = pneg %p285
      $region42: #{unet_decoder_forward.4} parent=35 // pred_check_branch
        %598 = sbr.rel (%p596) target = $region44
      $region43: #{unet_decoder_forward.4} parent=35 // pred_region
        %v599 = vld [vmem:[#allocation2] sm:$0xff]
        %v600 = vld [vmem:[#allocation2 + $0x8] sm:$0xff]
        %v601 = vld [vmem:[#allocation2 + $0x10] sm:$0xff]
        %v602 = vld [vmem:[#allocation2 + $0x18] sm:$0xff]
        %v603 = vld [vmem:[#allocation2 + $0x20] sm:$0xff]
        %v604 = vld [vmem:[#allocation2 + $0x28] sm:$0xff]
        %v605 = vld [vmem:[#allocation2 + $0x30] sm:$0xff]
        %v606 = vld [vmem:[#allocation2 + $0x38] sm:$0xff]
        %v607 = vld [vmem:[%s2] sm:$0xff]
        %v608 = vld [vmem:[%s2 + $0x8] sm:$0xff]
        %v609 = vld [vmem:[%s2 + $0x10] sm:$0xff]
        %v610 = vld [vmem:[%s2 + $0x18] sm:$0xff]
        %612 = vset.pattern.permute.xlu0 0
        %613 = vperm.xlu0 %612, %v607
        %v614 = vpop.permute.xlu0 %613
        %617 = vset.pattern.permute.xlu0 0
        %618 = vperm.xlu0 %617, %v608
        %v619 = vpop.permute.xlu0 %618
        %622 = vset.pattern.permute.xlu0 0
        %623 = vperm.xlu0 %622, %v609
        %v624 = vpop.permute.xlu0 %623
        %627 = vset.pattern.permute.xlu0 0
        %628 = vperm.xlu0 %627, %v610
        %v629 = vpop.permute.xlu0 %628
        %v631 = vmul.f32 %v599, %v614
        %v632 = vmul.f32 %v600, %v614
        %v633 = vmul.f32 %v601, %v619
        %v634 = vmul.f32 %v602, %v619
        %v635 = vmul.f32 %v603, %v624
        %v636 = vmul.f32 %v604, %v624
        %v637 = vmul.f32 %v605, %v629
        %v638 = vmul.f32 %v606, %v629
        %v639 = vld [vmem:[%s3] sm:$0xff]
        %v640 = vld [vmem:[%s3 + $0x8] sm:$0xff]
        %v641 = vld [vmem:[%s3 + $0x10] sm:$0xff]
        %v642 = vld [vmem:[%s3 + $0x18] sm:$0xff]
        %644 = vset.pattern.permute.xlu0 0
        %645 = vperm.xlu0 %644, %v639
        %v646 = vpop.permute.xlu0 %645
        %649 = vset.pattern.permute.xlu0 0
        %650 = vperm.xlu0 %649, %v640
        %v651 = vpop.permute.xlu0 %650
        %654 = vset.pattern.permute.xlu0 0
        %655 = vperm.xlu0 %654, %v641
        %v656 = vpop.permute.xlu0 %655
        %659 = vset.pattern.permute.xlu0 0
        %660 = vperm.xlu0 %659, %v642
        %v661 = vpop.permute.xlu0 %660
        %v663 = vadd.f32 %v631, %v646
        %v664 = vadd.f32 %v632, %v646
        %v665 = vadd.f32 %v633, %v651
        %v666 = vadd.f32 %v634, %v651
        %v667 = vadd.f32 %v635, %v656
        %v668 = vadd.f32 %v636, %v656
        %v669 = vadd.f32 %v637, %v661
        %v670 = vadd.f32 %v638, %v661
        %v671 = vmax.f32 %v663, 0.0
        %v672 = vmax.f32 %v664, 0.0
        %v673 = vmax.f32 %v665, 0.0
        %v674 = vmax.f32 %v666, 0.0
        %v675 = vmax.f32 %v667, 0.0
        %v676 = vmax.f32 %v668, 0.0
        %v677 = vmax.f32 %v669, 0.0
        %v678 = vmax.f32 %v670, 0.0
        %679 = vst [vmem:[%s283] sm:$0xff] %v671
        %680 = vst [vmem:[%s283 + $0x8] sm:$0xff] %v672
        %681 = vst [vmem:[%s283 + $0x10] sm:$0xff] %v673
        %682 = vst [vmem:[%s283 + $0x18] sm:$0xff] %v674
        %683 = vst [vmem:[%s283 + $0x20] sm:$0xff] %v675
        %684 = vst [vmem:[%s283 + $0x28] sm:$0xff] %v676
        %685 = vst [vmem:[%s283 + $0x30] sm:$0xff] %v677
        %686 = vst [vmem:[%s283 + $0x38] sm:$0xff] %v678
      $region44: #{unet_decoder_forward.4} parent=35 // pred_fallthru
        _
      %s687 = smul.u32 2, %s21
      %p688 = scmp.lt.s32.totalorder %s20, 1
      %s689 = scalar_select %p688, %s20, 1
      %p690 = scmp.lt.s32.totalorder %s687, 1
      %s691 = scalar_select %p690, %s687, 1
      %s692 = smul.addr %s689, 8
      %s693 = sadd.s32 %s691, %s692
      %s694 = smul.addr %s693, 8
      %s695 = scalar_lea.vmem %s4, %s694
      // Predicated region
      $region45: #{unet_decoder_forward.4} parent=35 // pred_check
        %p696 = pneg %p152
      $region46: #{unet_decoder_forward.4} parent=35 // pred_check_branch
        %698 = sbr.rel (%p696) target = $region48
      $region47: #{unet_decoder_forward.4} parent=35 // pred_region
        %s699 = smul.u32 2, %s21
      $region48: #{unet_decoder_forward.4} parent=35 // pred_fallthru
        _
    $region36: #{unet_decoder_forward.4} parent=5 // pred_fallthru
      _
    %p700 = scmp.le.s32.totalorder 2, %s10
    // Predicated region
    $region49: #{unet_decoder_forward.4} parent=5 // pred_check
      %p701 = pneg %p700
    $region50: #{unet_decoder_forward.4} parent=5 // pred_check_branch
      %703 = sbr.rel (%p701) target = $region52
    $region51: #{unet_decoder_forward.4} parent=5 // pred_region
      %s704 = ssub.s32 %s10, 2
      // Predicated region
      $region53: #{unet_decoder_forward.4} parent=51 // pred_check
        %p705 = pneg %p158
      $region54: #{unet_decoder_forward.4} parent=51 // pred_check_branch
        %707 = sbr.rel (%p705) target = $region56
      $region55: #{unet_decoder_forward.4} parent=51 // pred_region
        %s708 = smul.u32 2, %s24
        %p709 = scmp.lt.s32.totalorder %s23, 1
        %s710 = scalar_select %p709, %s23, 1
        %p711 = scmp.lt.s32.totalorder %s708, 1
        %s712 = scalar_select %p711, %s708, 1
        %s713 = smul.addr %s710, 8
        %s714 = sadd.s32 %s712, %s713
        %s715 = smul.addr %s714, 8
        %s716 = scalar_lea.vmem %s4, %s715
      $region56: #{unet_decoder_forward.4} parent=51 // pred_fallthru
        _
    $region52: #{unet_decoder_forward.4} parent=5 // pred_fallthru
      _
  $region6: #{unet_decoder_forward.4} parent=0 // loop_footer
    %s14 = sadd.s32 1, %s10
  $region7: #{unet_decoder_forward.4} parent=0 // loop_footer_branch
    %9 = sbr.rel target = $region3
  $region8: #{unet_decoder_forward.4} parent=0 // loop_exit
    _

// kernel: unet_decoder_forward.5
$region0: #{unet_decoder_forward.5}
  #allocation0 [shape = 'u32[]', space=smem, size = 0x4, offset = 0x4, fixed_abs, tag = 'smem constant byte address 0x4 - core index']
  #allocation1 [shape = 'u32[144,128]{1,0:T(1,128)}', space=vmem, size = 0x12000, scoped, tag = 'internal scratch']
  #allocation2 [shape = 'f32[64,256]{1,0:T(8,128)}', space=vmem, size = 0x10000, scoped, tag = 'scratch operand']
  %s0 = inlined_call_operand.vmem [shape: f32[2,32,256], index: 0, kind: input, shape index: {}]
  %s1 = inlined_call_operand.vmem [shape: f32[64,32], index: 1, kind: input, shape index: {}]
  %s2 = inlined_call_operand.vmem [shape: f32[64,1], index: 2, kind: input, shape index: {}]
  %s3 = inlined_call_operand.vmem [shape: f32[64,1], index: 3, kind: input, shape index: {}]
  %s4 = inlined_call_operand.vmem [shape: f32[2,64,256], index: 4, kind: output, shape index: {}]
  %s5 = sld [smem:[#allocation0]]
  $region57: #{unet_decoder_forward.5} parent=0
    _
  %s7 = ssub.s32 1, %s5
  %s8 = scalar_select 0, %s7, %s5
  loop: start=0, step=1, limit=4
  $region2: #{unet_decoder_forward.5} parent=0 // loop_pre_header
    _
  $region3: #{unet_decoder_forward.5} parent=0 // loop_header
    %s10 = sphi 0, %s14
    %p11 = scmp.ge.s32.totalorder %s10, 4
    %s17 = sphi 0, %s36
    %s18 = sphi 0, %s32
    %s19 = sphi 0, %s28
    %s20 = sphi 0, %s17
    %s21 = sphi 0, %s18
    %s22 = sphi 0, %s19
    %s23 = sphi 0, %s20
    %s24 = sphi 0, %s21
    %s25 = sphi 0, %s22
    %s43 = sphi 0, %s45
    %s46 = sphi 0, %s43
    %s47 = sphi 0, %s46
    %s63 = sphi 0, %s47
    %s69 = sphi 0, %s71
    %s72 = sphi 0, %s69
    %s73 = sphi 0, %s72
    %s89 = sphi 0, %s73
    %s93 = sphi 0, %s93
    %s95 = sphi 0, %s93
    %s96 = sphi 0, %s95
    %s110 = sphi 0, %s96
    %s114 = sphi 0, %s114
    %s116 = sphi 0, %s114
    %s117 = sphi 0, %s116
    %s131 = sphi 0, %s117
    %s139 = sphi 0, %s141
    %s142 = sphi 0, %s139
    %s143 = sphi 0, %s142
    %s159 = sphi 0, %s143
  $region4: #{unet_decoder_forward.5} parent=0 // loop_header_branch
    %13 = sbr.rel (%p11) target = $region8
  $region5: #{unet_decoder_forward.5} parent=0 // loop_body
    %s15 = ssub.s32 %s10, 1
    %s16 = ssub.s32 %s10, 2
    %s26 = sadd.s32 1, %s19
    %p27 = scmp.ge.s32.totalorder %s26, 1
    %s28 = scalar_select %p27, 0, %s26
    %s29 = sadd.s32 1, %s18
    %s30 = scalar_select %p27, %s29, %s18
    %p31 = scmp.ge.s32.totalorder %s30, 1
    %s32 = scalar_select %p31, 0, %s30
    %s33 = sadd.s32 1, %s17
    %s34 = scalar_select %p31, %s33, %s17
    %p35 = scmp.ge.s32.totalorder %s34, 2
    %s36 = scalar_select %p35, 0, %s34
    %s37 = ssub.s32 %s17, %s36
    %s38 = ssub.s32 %s19, %s28
    %s39 = sor.u32 %s37, %s38
    %s40 = ssub.s32 %s18, %s32
    %s41 = sor.u32 %s39, %s40
    %p42 = scmp.eq.s32.totalorder %s41, 0
    %s44 = sadd.s32 %s43, 1
    %s45 = scalar_select %p42, %s43, %s44
    %p48 = pneg %p42
    %p49 = scmp.eq.s32.totalorder %s10, 1
    %p50 = por %p48, %p49
    %p51 = scmp.ne.s32.totalorder %s43, %s46
    %p52 = scmp.eq.s32.totalorder %s10, 0
    %p53 = por %p51, %p52
    %p54 = scmp.ne.s32.totalorder %s43, %s46
    %p55 = scmp.eq.s32.totalorder %s15, 1
    %p56 = por %p54, %p55
    %p57 = scmp.ne.s32.totalorder %s46, %s47
    %p58 = scmp.eq.s32.totalorder %s15, 0
    %p59 = por %p57, %p58
    %p60 = scmp.ne.s32.totalorder %s46, %s47
    %p61 = scmp.eq.s32.totalorder %s16, 1
    %p62 = por %p60, %p61
    %p64 = scmp.ne.s32.totalorder %s47, %s63
    %p65 = scmp.eq.s32.totalorder %s16, 0
    %p66 = por %p64, %p65
    %s67 = ssub.s32 %s19, %s28
    %p68 = scmp.eq.s32.totalorder %s67, 0
    %s70 = sadd.s32 %s69, 1
    %s71 = scalar_select %p68, %s69, %s70
    %p74 = pneg %p68
    %p75 = scmp.eq.s32.totalorder %s10, 1
    %p76 = por %p74, %p75
    %p77 = scmp.ne.s32.totalorder %s69, %s72
    %p78 = scmp.eq.s32.totalorder %s10, 0
    %p79 = por %p77, %p78
    %p80 = scmp.ne.s32.totalorder %s69, %s72
    %p81 = scmp.eq.s32.totalorder %s15, 1
    %p82 = por %p80, %p81
    %p83 = scmp.ne.s32.totalorder %s72, %s73
    %p84 = scmp.eq.s32.totalorder %s15, 0
    %p85 = por %p83, %p84
    %p86 = scmp.ne.s32.totalorder %s72, %s73
    %p87 = scmp.eq.s32.totalorder %s16, 1
    %p88 = por %p86, %p87
    %p90 = scmp.ne.s32.totalorder %s73, %s89
    %p91 = scmp.eq.s32.totalorder %s16, 0
    %p92 = por %p90, %p91
    %s94 = sadd.s32 %s93, 1
    %p97 = scmp.eq.s32.totalorder %s10, 1
    %p98 = scmp.ne.s32.totalorder %s93, %s95
    %p99 = scmp.eq.s32.totalorder %s10, 0
    %p100 = por %p98, %p99
    %p101 = scmp.ne.s32.totalorder %s93, %s95
    %p102 = scmp.eq.s32.totalorder %s15, 1
    %p103 = por %p101, %p102
    %p104 = scmp.ne.s32.totalorder %s95, %s96
    %p105 = scmp.eq.s32.totalorder %s15, 0
    %p106 = por %p104, %p105
    %p107 = scmp.ne.s32.totalorder %s95, %s96
    %p108 = scmp.eq.s32.totalorder %s16, 1
    %p109 = por %p107, %p108
    %p111 = scmp.ne.s32.totalorder %s96, %s110
    %p112 = scmp.eq.s32.totalorder %s16, 0
    %p113 = por %p111, %p112
    %s115 = sadd.s32 %s114, 1
    %p118 = scmp.eq.s32.totalorder %s10, 1
    %p119 = scmp.ne.s32.totalorder %s114, %s116
    %p120 = scmp.eq.s32.totalorder %s10, 0
    %p121 = por %p119, %p120
    %p122 = scmp.ne.s32.totalorder %s114, %s116
    %p123 = scmp.eq.s32.totalorder %s15, 1
    %p124 = por %p122, %p123
    %p125 = scmp.ne.s32.totalorder %s116, %s117
    %p126 = scmp.eq.s32.totalorder %s15, 0
    %p127 = por %p125, %p126
    %p128 = scmp.ne.s32.totalorder %s116, %s117
    %p129 = scmp.eq.s32.totalorder %s16, 1
    %p130 = por %p128, %p129
    %p132 = scmp.ne.s32.totalorder %s117, %s131
    %p133 = scmp.eq.s32.totalorder %s16, 0
    %p134 = por %p132, %p133
    %s135 = ssub.s32 %s17, %s36
    %s136 = ssub.s32 %s18, %s32
    %s137 = sor.u32 %s135, %s136
    %p138 = scmp.eq.s32.totalorder %s137, 0
    %s140 = sadd.s32 %s139, 1
    %s141 = scalar_select %p138, %s139, %s140
    %p144 = pneg %p138
    %p145 = scmp.eq.s32.totalorder %s10, 1
    %p146 = por %p144, %p145
    %p147 = scmp.ne.s32.totalorder %s139, %s142
    %p148 = scmp.eq.s32.totalorder %s10, 0
    %p149 = por %p147, %p148
    %p150 = scmp.ne.s32.totalorder %s139, %s142
    %p151 = scmp.eq.s32.totalorder %s15, 1
    %p152 = por %p150, %p151
    %p153 = scmp.ne.s32.totalorder %s142, %s143
    %p154 = scmp.eq.s32.totalorder %s15, 0
    %p155 = por %p153, %p154
    %p156 = scmp.ne.s32.totalorder %s142, %s143
    %p157 = scmp.eq.s32.totalorder %s16, 1
    %p158 = por %p156, %p157
    %p160 = scmp.ne.s32.totalorder %s143, %s159
    %p161 = scmp.eq.s32.totalorder %s16, 0
    %p162 = por %p160, %p161
    %p163 = scmp.le.s32.totalorder 1, %s10
    %p164 = scmp.lt.s32.totalorder %s10, 3
    %p165 = pnand %p163, %p164
    %p166 = pneg %p165
    // Predicated region
    $region9: #{unet_decoder_forward.5} parent=5 // pred_check
      _
    $region10: #{unet_decoder_forward.5} parent=5 // pred_check_branch
      %168 = sbr.rel (%p165) target = $region12
    $region11: #{unet_decoder_forward.5} parent=5 // pred_region
      %s169 = ssub.s32 %s10, 1
      // Predicated region
      $region13: #{unet_decoder_forward.5} parent=11 // pred_check
        %p170 = pneg %p85
      $region14: #{unet_decoder_forward.5} parent=11 // pred_check_branch
        %172 = sbr.rel (%p170) target = $region16
      $region15: #{unet_decoder_forward.5} parent=11 // pred_region
        %p173 = scmp.lt.s32.totalorder %s22, 0
        %s174 = scalar_select %p173, %s22, 0
        %s175 = smul.addr %s174, 8
        %s176 = scalar_lea.vmem %s1, %s175
      $region16: #{unet_decoder_forward.5} parent=11 // pred_fallthru
        _
      // Predicated region
      $region17: #{unet_decoder_forward.5} parent=11 // pred_check
        %p177 = pneg %p106
      $region18: #{unet_decoder_forward.5} parent=11 // pred_check_branch
        %179 = sbr.rel (%p177) target = $region20
      $region19: #{unet_decoder_forward.5} parent=11 // pred_region
        _
      $region20: #{unet_decoder_forward.5} parent=11 // pred_fallthru
        _
      // Predicated region
      $region21: #{unet_decoder_forward.5} parent=11 // pred_check
        %p180 = pneg %p127
      $region22: #{unet_decoder_forward.5} parent=11 // pred_check_branch
        %182 = sbr.rel (%p180) target = $region24
      $region23: #{unet_decoder_forward.5} parent=11 // pred_region
        _
      $region24: #{unet_decoder_forward.5} parent=11 // pred_fallthru
        _
    $region12: #{unet_decoder_forward.5} parent=5 // pred_fallthru
      _
    %p183 = scmp.lt.s32.totalorder %s10, 2
    // Predicated region
    $region25: #{unet_decoder_forward.5} parent=5 // pred_check
      %p184 = pneg %p183
    $region26: #{unet_decoder_forward.5} parent=5 // pred_check_branch
      %186 = sbr.rel (%p184) target = $region28
    $region27: #{unet_decoder_forward.5} parent=5 // pred_region
      // Predicated region
      $region29: #{unet_decoder_forward.5} parent=27 // pred_check
        %p187 = pneg %p53
      $region30: #{unet_decoder_forward.5} parent=27 // pred_check_branch
        %189 = sbr.rel (%p187) target = $region32
      $region31: #{unet_decoder_forward.5} parent=27 // pred_region
        %s190 = smul.u32 4, %s19
        %s191 = smul.u32 2, %s18
        %p192 = scmp.lt.s32.totalorder %s17, 1
        %s193 = scalar_select %p192, %s17, 1
        %p194 = scmp.lt.s32.totalorder %s190, 3
        %s195 = scalar_select %p194, %s190, 3
        %p196 = scmp.lt.s32.totalorder %s191, 1
        %s197 = scalar_select %p196, %s191, 1
        %s198 = smul.addr %s195, 2
        %s199 = sadd.s32 %s197, %s198
        %s200 = smul.addr %s193, 8
        %s201 = sadd.s32 %s199, %s200
        %s202 = smul.addr %s201, 8
        %s203 = scalar_lea.vmem %s0, %s202
        %s204 = smul.u32 4, %s19
        %s205 = smul.u32 2, %s18
      $region32: #{unet_decoder_forward.5} parent=27 // pred_fallthru
        _
    $region28: #{unet_decoder_forward.5} parent=5 // pred_fallthru
      _
    %p206 = scmp.le.s32.totalorder 1, %s10
    %p207 = scmp.lt.s32.totalorder %s10, 3
    %p208 = pnand %p206, %p207
    %p209 = pneg %p208
    // Predicated region
    $region33: #{unet_decoder_forward.5} parent=5 // pred_check
      _
    $region34: #{unet_decoder_forward.5} parent=5 // pred_check_branch
      %211 = sbr.rel (%p208) target = $region36
    $region35: #{unet_decoder_forward.5} parent=5 // pred_region
      %s212 = ssub.s32 %s10, 1
      %s213 = smul.u32 4, %s22
      %s214 = smul.u32 2, %s21
      %p215 = scmp.lt.s32.totalorder %s20, 1
      %s216 = scalar_select %p215, %s20, 1
      %p217 = scmp.lt.s32.totalorder %s213, 3
      %s218 = scalar_select %p217, %s213, 3
      %p219 = scmp.lt.s32.totalorder %s214, 1
      %s220 = scalar_select %p219, %s214, 1
      %s221 = smul.addr %s218, 2
      %s222 = sadd.s32 %s220, %s221
      %s223 = smul.addr %s216, 8
      %s224 = sadd.s32 %s222, %s223
      %s225 = smul.addr %s224, 8
      %s226 = scalar_lea.vmem %s0, %s225
      %p227 = pneg %p59
      %p228 = pneg %p56
      %p229 = scmp.lt.s32.totalorder %s22, 0
      %s230 = scalar_select %p229, %s22, 0
      %s231 = smul.addr %s230, 8
      %s232 = scalar_lea.vmem %s1, %s231
      %p233 = pneg %p85
      %p234 = pneg %p82
      %p235 = pneg %p106
      %p236 = pneg %p103
      %p237 = pneg %p127
      %p238 = pneg %p124
      %p239 = pneg %p155
      %p240 = pneg %p152
      %s241 = smul.u32 2, %s21
      %p242 = scmp.lt.s32.totalorder %s20, 1
      %s243 = scalar_select %p242, %s20, 1
      %p244 = scmp.lt.s32.totalorder %s241, 1
      %s245 = scalar_select %p244, %s241, 1
      %s246 = smul.addr %s243, 16
      %s247 = sadd.s32 %s245, %s246
      %s248 = smul.addr %s247, 8
      %s249 = scalar_lea.vmem %s4, %s248
      %s250 = smul.u32 4, %s22
      %s251 = smul.u32 2, %s21
      %p252 = scmp.lt.s32.totalorder %s20, 1
      %s253 = scalar_select %p252, %s20, 1
      %p254 = scmp.lt.s32.totalorder %s250, 3
      %s255 = scalar_select %p254, %s250, 3
      %p256 = scmp.lt.s32.totalorder %s251, 1
      %s257 = scalar_select %p256, %s251, 1
      %s258 = smul.addr %s255, 2
      %s259 = sadd.s32 %s257, %s258
      %s260 = smul.addr %s253, 8
      %s261 = sadd.s32 %s259, %s260
      %s262 = smul.addr %s261, 8
      %s263 = scalar_lea.vmem %s0, %s262
      %s264 = smul.u32 4, %s22
      %s265 = smul.u32 2, %s21
      %p266 = scmp.lt.s32.totalorder %s22, 0
      %s267 = scalar_select %p266, %s22, 0
      %s268 = smul.addr %s267, 8
      %s269 = scalar_lea.vmem %s1, %s268
      %s270 = smul.u32 2, %s21
      %p271 = scmp.lt.s32.totalorder %s20, 1
      %s272 = scalar_select %p271, %s20, 1
      %p273 = scmp.lt.s32.totalorder %s270, 1
      %s274 = scalar_select %p273, %s270, 1
      %s275 = smul.addr %s272, 16
      %s276 = sadd.s32 %s274, %s275
      %s277 = smul.addr %s276, 8
      %s278 = scalar_lea.vmem %s4, %s277
      %s279 = smul.u32 2, %s21
      %p280 = scmp.eq.s32.totalorder %s22, 0
      // Predicated region
      $region37: #{unet_decoder_forward.5} parent=35 // pred_check
        %p281 = pneg %p280
      $region38: #{unet_decoder_forward.5} parent=35 // pred_check_branch
        %283 = sbr.rel (%p281) target = $region40
      $region39: #{unet_decoder_forward.5} parent=35 // pred_region
        %284 = vst [vmem:[#allocation2] sm:$0xff] 0.0
        %285 = vst [vmem:[#allocation2 + $0x8] sm:$0xff] 0.0
        %286 = vst [vmem:[#allocation2 + $0x10] sm:$0xff] 0.0
        %287 = vst [vmem:[#allocation2 + $0x18] sm:$0xff] 0.0
        %288 = vst [vmem:[#allocation2 + $0x20] sm:$0xff] 0.0
        %289 = vst [vmem:[#allocation2 + $0x28] sm:$0xff] 0.0
        %290 = vst [vmem:[#allocation2 + $0x30] sm:$0xff] 0.0
        %291 = vst [vmem:[#allocation2 + $0x38] sm:$0xff] 0.0
        %292 = vst [vmem:[#allocation2 + $0x40] sm:$0xff] 0.0
        %293 = vst [vmem:[#allocation2 + $0x48] sm:$0xff] 0.0
        %294 = vst [vmem:[#allocation2 + $0x50] sm:$0xff] 0.0
        %295 = vst [vmem:[#allocation2 + $0x58] sm:$0xff] 0.0
        %296 = vst [vmem:[#allocation2 + $0x60] sm:$0xff] 0.0
        %297 = vst [vmem:[#allocation2 + $0x68] sm:$0xff] 0.0
        %298 = vst [vmem:[#allocation2 + $0x70] sm:$0xff] 0.0
        %299 = vst [vmem:[#allocation2 + $0x78] sm:$0xff] 0.0
      $region40: #{unet_decoder_forward.5} parent=35 // pred_fallthru
        _
      %v300 = vld [vmem:[#allocation2] sm:$0xff]
      %v301 = vld [vmem:[#allocation2 + $0x8] sm:$0xff]
      %v302 = vld [vmem:[#allocation2 + $0x10] sm:$0xff]
      %v303 = vld [vmem:[#allocation2 + $0x18] sm:$0xff]
      %v304 = vld [vmem:[#allocation2 + $0x20] sm:$0xff]
      %v305 = vld [vmem:[#allocation2 + $0x28] sm:$0xff]
      %v306 = vld [vmem:[#allocation2 + $0x30] sm:$0xff]
      %v307 = vld [vmem:[#allocation2 + $0x38] sm:$0xff]
      %v308 = vld [vmem:[#allocation2 + $0x40] sm:$0xff]
      %v309 = vld [vmem:[#allocation2 + $0x48] sm:$0xff]
      %v310 = vld [vmem:[#allocation2 + $0x50] sm:$0xff]
      %v311 = vld [vmem:[#allocation2 + $0x58] sm:$0xff]
      %v312 = vld [vmem:[#allocation2 + $0x60] sm:$0xff]
      %v313 = vld [vmem:[#allocation2 + $0x68] sm:$0xff]
      %v314 = vld [vmem:[#allocation2 + $0x70] sm:$0xff]
      %v315 = vld [vmem:[#allocation2 + $0x78] sm:$0xff]
      %v316 = vld [vmem:[%s269] sm:$0xff]
      %v317 = vld [vmem:[%s269 + $0x8] sm:$0xff]
      %v318 = vld [vmem:[%s269 + $0x10] sm:$0xff]
      %v319 = vld [vmem:[%s269 + $0x18] sm:$0xff]
      %v320 = vld [vmem:[%s269 + $0x20] sm:$0xff]
      %v321 = vld [vmem:[%s269 + $0x28] sm:$0xff]
      %v322 = vld [vmem:[%s269 + $0x30] sm:$0xff]
      %v323 = vld [vmem:[%s269 + $0x38] sm:$0xff]
      %v324 = vld [vmem:[%s263] sm:$0xff]
      %v325 = vld [vmem:[%s263 + $0x8] sm:$0xff]
      %v326 = vld [vmem:[%s263 + $0x10] sm:$0xff]
      %v327 = vld [vmem:[%s263 + $0x18] sm:$0xff]
      %v328 = vld [vmem:[%s263 + $0x20] sm:$0xff]
      %v329 = vld [vmem:[%s263 + $0x28] sm:$0xff]
      %v330 = vld [vmem:[%s263 + $0x30] sm:$0xff]
      %v331 = vld [vmem:[%s263 + $0x38] sm:$0xff]
      %vm332 = vcmask 261120
      %v334 = vsel %vm332, %v316, 0
      %v337 = vsel %vm332, %v317, 0
      %v340 = vsel %vm332, %v318, 0
      %v343 = vsel %vm332, %v319, 0
      %v346 = vsel %vm332, %v320, 0
      %v349 = vsel %vm332, %v321, 0
      %v352 = vsel %vm332, %v322, 0
      %v355 = vsel %vm332, %v323, 0
      %357 = vmatprep.subr.mxu0 %v325
      %358 = vmatpush1.msra.mxu0 %v324
      %359 = vmatprep.subr.mxu0 %v327
      %360 = vmatpush1.msra.mxu0 %v326
      %361 = vmatprep.subr.mxu0 %v329
      %362 = vmatpush1.msra.mxu0 %v328
      %363 = vmatprep.subr.mxu0 %v331
      %364 = vmatpush1.msra.mxu0 %v330
      %365 = vmatprep.subr.mxu0 0.0
      %366 = vmatpush1.msra.mxu0 0.0
      %367 = vmatprep.subr.mxu0 0.0
      %368 = vmatpush1.msra.mxu0 0.0
      %369 = vmatprep.subr.mxu0 0.0
      %370 = vmatpush1.msra.mxu0 0.0
      %371 = vmatprep.subr.mxu0 0.0
      %372 = vmatpush1.msra.mxu0 0.0
      %373 = vmatprep.subr.mxu0 0.0
      %374 = vmatpush1.msra.mxu0 0.0
      %375 = vmatprep.subr.mxu0 0.0
      %376 = vmatpush1.msra.mxu0 0.0
      %377 = vmatprep.subr.mxu0 0.0
      %378 = vmatpush1.msra.mxu0 0.0
      %379 = vmatprep.subr.mxu0 0.0
      %380 = vmatpush1.msra.mxu0 0.0
      %381 = vmatprep.subr.mxu0 0.0
      %382 = vmatpush1.msra.mxu0 0.0
      %383 = vmatprep.subr.mxu0 0.0
      %384 = vmatpush1.msra.mxu0 0.0
      %385 = vmatprep.subr.mxu0 0.0
      %386 = vmatpush1.msra.mxu0 0.0
      %387 = vmatprep.subr.mxu0 0.0
      %388 = vmatpush1.msra.mxu0 0.0
      %389 = vmatprep.subr.mxu0 0.0
      %390 = vmatpush1.msra.mxu0 0.0
      %391 = vmatprep.subr.mxu0 0.0
      %392 = vmatpush1.msra.mxu0 0.0
      %393 = vmatprep.subr.mxu0 0.0
      %394 = vmatpush1.msra.mxu0 0.0
      %395 = vmatprep.subr.mxu0 0.0
      %396 = vmatpush1.msra.mxu0 0.0
      %397 = vmatprep.subr.mxu0 0.0
      %398 = vmatpush1.msra.mxu0 0.0
      %399 = vmatprep.subr.mxu0 0.0
      %400 = vmatpush1.msra.mxu0 0.0
      %401 = vmatprep.subr.mxu0 0.0
      %402 = vmatpush1.msra.mxu0 0.0
      %403 = vmatprep.subr.mxu0 0.0
      %404 = vmatpush1.msra.mxu0 0.0
      %405 = vmatprep.subr.mxu0 0.0
      %406 = vmatpush1.msra.mxu0 0.0
      %407 = vmatprep.subr.mxu0 0.0
      %408 = vmatpush1.msra.mxu0 0.0
      %409 = vmatprep.subr.mxu0 0.0
      %410 = vmatpush1.msra.mxu0 0.0
      %411 = vmatprep.subr.mxu0 0.0
      %412 = vmatpush1.msra.mxu0 0.0
      %413 = vmatprep.subr.mxu0 0.0
      %414 = vmatpush1.msra.mxu0 0.0
      %415 = vmatprep.subr.mxu0 0.0
      %416 = vmatpush1.msra.mxu0 0.0
      %417 = vmatprep.subr.mxu0 0.0
      %418 = vmatpush1.msra.mxu0 0.0
      %419 = vmatprep.subr.mxu0 0.0
      %420 = vmatpush1.msra.mxu0 0.0
      %421 = vmatprep.mubr.f32.mxu0 0.0
      %422 = vmatmul.mubr.f32.gmra.mrb[0].mxu0 %v334
      %v423 = vpop.f32.mrb[0].mxu0
      %v424 = vadd.f32 0.0, %v423
      %v425 = vpop.f32.mrb[0].mxu0
      %v426 = vadd.f32 0.0, %v425
      %427 = vmatprep.mubr.f32.mxu0 0.0
      %428 = vmatmul.mubr.f32.gmra.mrb[0].mxu0 %v337
      %v429 = vpop.f32.mrb[0].mxu0
      %v430 = vadd.f32 0.0, %v429
      %v431 = vpop.f32.mrb[0].mxu0
      %v432 = vadd.f32 0.0, %v431
      %433 = vmatprep.mubr.f32.mxu0 0.0
      %434 = vmatmul.mubr.f32.gmra.mrb[0].mxu0 %v340
      %v435 = vpop.f32.mrb[0].mxu0
      %v436 = vadd.f32 0.0, %v435
      %v437 = vpop.f32.mrb[0].mxu0
      %v438 = vadd.f32 0.0, %v437
      %439 = vmatprep.mubr.f32.mxu0 0.0
      %440 = vmatmul.mubr.f32.gmra.mrb[0].mxu0 %v343
      %v441 = vpop.f32.mrb[0].mxu0
      %v442 = vadd.f32 0.0, %v441
      %v443 = vpop.f32.mrb[0].mxu0
      %v444 = vadd.f32 0.0, %v443
      %445 = vmatprep.mubr.f32.mxu0 0.0
      %446 = vmatmul.mubr.f32.gmra.mrb[0].mxu0 %v346
      %v447 = vpop.f32.mrb[0].mxu0
      %v448 = vadd.f32 0.0, %v447
      %v449 = vpop.f32.mrb[0].mxu0
      %v450 = vadd.f32 0.0, %v449
      %451 = vmatprep.mubr.f32.mxu0 0.0
      %452 = vmatmul.mubr.f32.gmra.mrb[0].mxu0 %v349
      %v453 = vpop.f32.mrb[0].mxu0
      %v454 = vadd.f32 0.0, %v453
      %v455 = vpop.f32.mrb[0].mxu0
      %v456 = vadd.f32 0.0, %v455
      %457 = vmatprep.mubr.f32.mxu0 0.0
      %458 = vmatmul.mubr.f32.gmra.mrb[0].mxu0 %v352
      %v459 = vpop.f32.mrb[0].mxu0
      %v460 = vadd.f32 0.0, %v459
      %v461 = vpop.f32.mrb[0].mxu0
      %v462 = vadd.f32 0.0, %v461
      %463 = vmatprep.mubr.f32.mxu0 0.0
      %464 = vmatmul.mubr.f32.gmra.mrb[0].mxu0 %v355
      %v465 = vpop.f32.mrb[0].mxu0
      %v466 = vadd.f32 0.0, %v465
      %v467 = vpop.f32.mrb[0].mxu0
      %v468 = vadd.f32 0.0, %v467
      %469 = vdwg.mxu0
      %v470 = vadd.f32 %v300, %v424
      %v471 = vadd.f32 %v301, %v426
      %v472 = vadd.f32 %v302, %v430
      %v473 = vadd.f32 %v303, %v432
      %v474 = vadd.f32 %v304, %v436
      %v475 = vadd.f32 %v305, %v438
      %v476 = vadd.f32 %v306, %v442
      %v477 = vadd.f32 %v307, %v444
      %v478 = vadd.f32 %v308, %v448
      %v479 = vadd.f32 %v309, %v450
      %v480 = vadd.f32 %v310, %v454
      %v481 = vadd.f32 %v311, %v456
      %v482 = vadd.f32 %v312, %v460
      %v483 = vadd.f32 %v313, %v462
      %v484 = vadd.f32 %v314, %v466
      %v485 = vadd.f32 %v315, %v468
      %486 = vst [vmem:[#allocation2] sm:$0xff] %v470
      %487 = vst [vmem:[#allocation2 + $0x8] sm:$0xff] %v471
      %488 = vst [vmem:[#allocation2 + $0x10] sm:$0xff] %v472
      %489 = vst [vmem:[#allocation2 + $0x18] sm:$0xff] %v473
      %490 = vst [vmem:[#allocation2 + $0x20] sm:$0xff] %v474
      %491 = vst [vmem:[#allocation2 + $0x28] sm:$0xff] %v475
      %492 = vst [vmem:[#allocation2 + $0x30] sm:$0xff] %v476
      %493 = vst [vmem:[#allocation2 + $0x38] sm:$0xff] %v477
      %494 = vst [vmem:[#allocation2 + $0x40] sm:$0xff] %v478
      %495 = vst [vmem:[#allocation2 + $0x48] sm:$0xff] %v479
      %496 = vst [vmem:[#allocation2 + $0x50] sm:$0xff] %v480
      %497 = vst [vmem:[#allocation2 + $0x58] sm:$0xff] %v481
      %498 = vst [vmem:[#allocation2 + $0x60] sm:$0xff] %v482
      %499 = vst [vmem:[#allocation2 + $0x68] sm:$0xff] %v483
      %500 = vst [vmem:[#allocation2 + $0x70] sm:$0xff] %v484
      %501 = vst [vmem:[#allocation2 + $0x78] sm:$0xff] %v485
      // Predicated region
      $region41: #{unet_decoder_forward.5} parent=35 // pred_check
        %p502 = pneg %p280
      $region42: #{unet_decoder_forward.5} parent=35 // pred_check_branch
        %504 = sbr.rel (%p502) target = $region44
      $region43: #{unet_decoder_forward.5} parent=35 // pred_region
        %v505 = vld [vmem:[#allocation2] sm:$0xff]
        %v506 = vld [vmem:[#allocation2 + $0x8] sm:$0xff]
        %v507 = vld [vmem:[#allocation2 + $0x10] sm:$0xff]
        %v508 = vld [vmem:[#allocation2 + $0x18] sm:$0xff]
        %v509 = vld [vmem:[#allocation2 + $0x20] sm:$0xff]
        %v510 = vld [vmem:[#allocation2 + $0x28] sm:$0xff]
        %v511 = vld [vmem:[#allocation2 + $0x30] sm:$0xff]
        %v512 = vld [vmem:[#allocation2 + $0x38] sm:$0xff]
        %v513 = vld [vmem:[#allocation2 + $0x40] sm:$0xff]
        %v514 = vld [vmem:[#allocation2 + $0x48] sm:$0xff]
        %v515 = vld [vmem:[#allocation2 + $0x50] sm:$0xff]
        %v516 = vld [vmem:[#allocation2 + $0x58] sm:$0xff]
        %v517 = vld [vmem:[#allocation2 + $0x60] sm:$0xff]
        %v518 = vld [vmem:[#allocation2 + $0x68] sm:$0xff]
        %v519 = vld [vmem:[#allocation2 + $0x70] sm:$0xff]
        %v520 = vld [vmem:[#allocation2 + $0x78] sm:$0xff]
        %v521 = vld [vmem:[%s2] sm:$0xff]
        %v522 = vld [vmem:[%s2 + $0x8] sm:$0xff]
        %v523 = vld [vmem:[%s2 + $0x10] sm:$0xff]
        %v524 = vld [vmem:[%s2 + $0x18] sm:$0xff]
        %v525 = vld [vmem:[%s2 + $0x20] sm:$0xff]
        %v526 = vld [vmem:[%s2 + $0x28] sm:$0xff]
        %v527 = vld [vmem:[%s2 + $0x30] sm:$0xff]
        %v528 = vld [vmem:[%s2 + $0x38] sm:$0xff]
        %530 = vset.pattern.permute.xlu0 0
        %531 = vperm.xlu0 %530, %v521
        %v532 = vpop.permute.xlu0 %531
        %535 = vset.pattern.permute.xlu0 0
        %536 = vperm.xlu0 %535, %v522
        %v537 = vpop.permute.xlu0 %536
        %540 = vset.pattern.permute.xlu0 0
        %541 = vperm.xlu0 %540, %v523
        %v542 = vpop.permute.xlu0 %541
        %545 = vset.pattern.permute.xlu0 0
        %546 = vperm.xlu0 %545, %v524
        %v547 = vpop.permute.xlu0 %546
        %550 = vset.pattern.permute.xlu0 0
        %551 = vperm.xlu0 %550, %v525
        %v552 = vpop.permute.xlu0 %551
        %555 = vset.pattern.permute.xlu0 0
        %556 = vperm.xlu0 %555, %v526
        %v557 = vpop.permute.xlu0 %556
        %560 = vset.pattern.permute.xlu0 0
        %561 = vperm.xlu0 %560, %v527
        %v562 = vpop.permute.xlu0 %561
        %565 = vset.pattern.permute.xlu0 0
        %566 = vperm.xlu0 %565, %v528
        %v567 = vpop.permute.xlu0 %566
        %v569 = vmul.f32 %v505, %v532
        %v570 = vmul.f32 %v506, %v532
        %v571 = vmul.f32 %v507, %v537
        %v572 = vmul.f32 %v508, %v537
        %v573 = vmul.f32 %v509, %v542
        %v574 = vmul.f32 %v510, %v542
        %v575 = vmul.f32 %v511, %v547
        %v576 = vmul.f32 %v512, %v547
        %v577 = vmul.f32 %v513, %v552
        %v578 = vmul.f32 %v514, %v552
        %v579 = vmul.f32 %v515, %v557
        %v580 = vmul.f32 %v516, %v557
        %v581 = vmul.f32 %v517, %v562
        %v582 = vmul.f32 %v518, %v562
        %v583 = vmul.f32 %v519, %v567
        %v584 = vmul.f32 %v520, %v567
        %v585 = vld [vmem:[%s3] sm:$0xff]
        %v586 = vld [vmem:[%s3 + $0x8] sm:$0xff]
        %v587 = vld [vmem:[%s3 + $0x10] sm:$0xff]
        %v588 = vld [vmem:[%s3 + $0x18] sm:$0xff]
        %v589 = vld [vmem:[%s3 + $0x20] sm:$0xff]
        %v590 = vld [vmem:[%s3 + $0x28] sm:$0xff]
        %v591 = vld [vmem:[%s3 + $0x30] sm:$0xff]
        %v592 = vld [vmem:[%s3 + $0x38] sm:$0xff]
        %594 = vset.pattern.permute.xlu0 0
        %595 = vperm.xlu0 %594, %v585
        %v596 = vpop.permute.xlu0 %595
        %599 = vset.pattern.permute.xlu0 0
        %600 = vperm.xlu0 %599, %v586
        %v601 = vpop.permute.xlu0 %600
        %604 = vset.pattern.permute.xlu0 0
        %605 = vperm.xlu0 %604, %v587
        %v606 = vpop.permute.xlu0 %605
        %609 = vset.pattern.permute.xlu0 0
        %610 = vperm.xlu0 %609, %v588
        %v611 = vpop.permute.xlu0 %610
        %614 = vset.pattern.permute.xlu0 0
        %615 = vperm.xlu0 %614, %v589
        %v616 = vpop.permute.xlu0 %615
        %619 = vset.pattern.permute.xlu0 0
        %620 = vperm.xlu0 %619, %v590
        %v621 = vpop.permute.xlu0 %620
        %624 = vset.pattern.permute.xlu0 0
        %625 = vperm.xlu0 %624, %v591
        %v626 = vpop.permute.xlu0 %625
        %629 = vset.pattern.permute.xlu0 0
        %630 = vperm.xlu0 %629, %v592
        %v631 = vpop.permute.xlu0 %630
        %v633 = vadd.f32 %v569, %v596
        %v634 = vadd.f32 %v570, %v596
        %v635 = vadd.f32 %v571, %v601
        %v636 = vadd.f32 %v572, %v601
        %v637 = vadd.f32 %v573, %v606
        %v638 = vadd.f32 %v574, %v606
        %v639 = vadd.f32 %v575, %v611
        %v640 = vadd.f32 %v576, %v611
        %v641 = vadd.f32 %v577, %v616
        %v642 = vadd.f32 %v578, %v616
        %v643 = vadd.f32 %v579, %v621
        %v644 = vadd.f32 %v580, %v621
        %v645 = vadd.f32 %v581, %v626
        %v646 = vadd.f32 %v582, %v626
        %v647 = vadd.f32 %v583, %v631
        %v648 = vadd.f32 %v584, %v631
        %v649 = vmax.f32 %v633, 0.0
        %v650 = vmax.f32 %v634, 0.0
        %v651 = vmax.f32 %v635, 0.0
        %v652 = vmax.f32 %v636, 0.0
        %v653 = vmax.f32 %v637, 0.0
        %v654 = vmax.f32 %v638, 0.0
        %v655 = vmax.f32 %v639, 0.0
        %v656 = vmax.f32 %v640, 0.0
        %v657 = vmax.f32 %v641, 0.0
        %v658 = vmax.f32 %v642, 0.0
        %v659 = vmax.f32 %v643, 0.0
        %v660 = vmax.f32 %v644, 0.0
        %v661 = vmax.f32 %v645, 0.0
        %v662 = vmax.f32 %v646, 0.0
        %v663 = vmax.f32 %v647, 0.0
        %v664 = vmax.f32 %v648, 0.0
        %665 = vst [vmem:[%s278] sm:$0xff] %v649
        %666 = vst [vmem:[%s278 + $0x8] sm:$0xff] %v650
        %667 = vst [vmem:[%s278 + $0x10] sm:$0xff] %v651
        %668 = vst [vmem:[%s278 + $0x18] sm:$0xff] %v652
        %669 = vst [vmem:[%s278 + $0x20] sm:$0xff] %v653
        %670 = vst [vmem:[%s278 + $0x28] sm:$0xff] %v654
        %671 = vst [vmem:[%s278 + $0x30] sm:$0xff] %v655
        %672 = vst [vmem:[%s278 + $0x38] sm:$0xff] %v656
        %673 = vst [vmem:[%s278 + $0x40] sm:$0xff] %v657
        %674 = vst [vmem:[%s278 + $0x48] sm:$0xff] %v658
        %675 = vst [vmem:[%s278 + $0x50] sm:$0xff] %v659
        %676 = vst [vmem:[%s278 + $0x58] sm:$0xff] %v660
        %677 = vst [vmem:[%s278 + $0x60] sm:$0xff] %v661
        %678 = vst [vmem:[%s278 + $0x68] sm:$0xff] %v662
        %679 = vst [vmem:[%s278 + $0x70] sm:$0xff] %v663
        %680 = vst [vmem:[%s278 + $0x78] sm:$0xff] %v664
      $region44: #{unet_decoder_forward.5} parent=35 // pred_fallthru
        _
      %s681 = smul.u32 2, %s21
      %p682 = scmp.lt.s32.totalorder %s20, 1
      %s683 = scalar_select %p682, %s20, 1
      %p684 = scmp.lt.s32.totalorder %s681, 1
      %s685 = scalar_select %p684, %s681, 1
      %s686 = smul.addr %s683, 16
      %s687 = sadd.s32 %s685, %s686
      %s688 = smul.addr %s687, 8
      %s689 = scalar_lea.vmem %s4, %s688
      // Predicated region
      $region45: #{unet_decoder_forward.5} parent=35 // pred_check
        %p690 = pneg %p152
      $region46: #{unet_decoder_forward.5} parent=35 // pred_check_branch
        %692 = sbr.rel (%p690) target = $region48
      $region47: #{unet_decoder_forward.5} parent=35 // pred_region
        %s693 = smul.u32 2, %s21
      $region48: #{unet_decoder_forward.5} parent=35 // pred_fallthru
        _
    $region36: #{unet_decoder_forward.5} parent=5 // pred_fallthru
      _
    %p694 = scmp.le.s32.totalorder 2, %s10
    // Predicated region
    $region49: #{unet_decoder_forward.5} parent=5 // pred_check
      %p695 = pneg %p694
    $region50: #{unet_decoder_forward.5} parent=5 // pred_check_branch
      %697 = sbr.rel (%p695) target = $region52
    $region51: #{unet_decoder_forward.5} parent=5 // pred_region
      %s698 = ssub.s32 %s10, 2
      // Predicated region
      $region53: #{unet_decoder_forward.5} parent=51 // pred_check
        %p699 = pneg %p158
      $region54: #{unet_decoder_forward.5} parent=51 // pred_check_branch
        %701 = sbr.rel (%p699) target = $region56
      $region55: #{unet_decoder_forward.5} parent=51 // pred_region
        %s702 = smul.u32 2, %s24
        %p703 = scmp.lt.s32.totalorder %s23, 1
        %s704 = scalar_select %p703, %s23, 1
        %p705 = scmp.lt.s32.totalorder %s702, 1
        %s706 = scalar_select %p705, %s702, 1
        %s707 = smul.addr %s704, 16
        %s708 = sadd.s32 %s706, %s707
        %s709 = smul.addr %s708, 8
        %s710 = scalar_lea.vmem %s4, %s709
      $region56: #{unet_decoder_forward.5} parent=51 // pred_fallthru
        _
    $region52: #{unet_decoder_forward.5} parent=5 // pred_fallthru
      _
  $region6: #{unet_decoder_forward.5} parent=0 // loop_footer
    %s14 = sadd.s32 1, %s10
  $region7: #{unet_decoder_forward.5} parent=0 // loop_footer_branch
    %9 = sbr.rel target = $region3
  $region8: #{unet_decoder_forward.5} parent=0 // loop_exit
    _

</llo_original>
